<compile_context>
chip_gen: v5e
topology: v5e:2x2
jax: 0.10.0
libtpu: 0.0.40
codegen_flags: <defaults>
</compile_context>

<pallas_src>
import functools
import math

import jax
import jax.numpy as jnp
from jax.experimental import pallas as pl
from jax.experimental.pallas import tpu as pltpu

BN_EPS = 1e-5
MM_VMEM_LIMIT = 32 * 1024 * 1024


# ---------------------------------------------------------------------------
# Small helpers
# ---------------------------------------------------------------------------
def _round_up(x, m):
    return ((x + m - 1) // m) * m


def _tile_and_pad(d, cap, mult):
    """Pick a tile (multiple of `mult`, <= cap) and the padded dim it divides.

    Prefers a tile that divides the already 8/128-aligned dim so no extra HBM
    pad/slice copy is needed; falls back to padding only for awkward shapes.
    """
    dp = _round_up(d, mult)
    if dp <= cap:
        return dp, dp
    t = (cap // mult) * mult
    while t > 0 and dp % t:
        t -= mult
    if t >= max(mult, cap // 4):
        return t, dp
    t = (cap // mult) * mult
    return t, _round_up(dp, t)


# ---------------------------------------------------------------------------
# Pallas kernels
# ---------------------------------------------------------------------------
def _mm_kernel(*refs, relu, has_bias):
    """Tiled matmul (bf16 in, f32 acc) with optional fused bias add + ReLU."""
    if has_bias:
        a_ref, b_ref, bias_ref, o_ref, acc_ref = refs
    else:
        a_ref, b_ref, o_ref, acc_ref = refs

    @pl.when(pl.program_id(2) == 0)
    def _():
        acc_ref[...] = jnp.zeros_like(acc_ref)

    acc_ref[...] += jnp.dot(a_ref[...], b_ref[...],
                            preferred_element_type=jnp.float32)

    @pl.when(pl.program_id(2) == pl.num_programs(2) - 1)
    def _():
        r = acc_ref[...]
        if has_bias:
            r = r + bias_ref[...]
        if relu:
            r = jnp.maximum(r, 0.0)
        o_ref[...] = r.astype(o_ref.dtype)


def _affine_kernel(*refs, relu, has_res):
    """y = x*scale + shift (+ residual) (+ ReLU); scale/shift broadcast over rows."""
    if has_res:
        x_ref, s_ref, t_ref, r_ref, o_ref = refs
    else:
        x_ref, s_ref, t_ref, o_ref = refs
    y = x_ref[...] * s_ref[...] + t_ref[...]
    if has_res:
        y = y + r_ref[...]
    if relu:
        y = jnp.maximum(y, 0.0)
    o_ref[...] = y.astype(o_ref.dtype)


def _logits_kernel(q_ref, k_ref, queue_ref, pos_ref, neg_ref, *, inv_t):
    """Per-representation contrastive logits: pos = q·k, neg = q @ queue (q, k L2-normalized)."""
    q = q_ref[0]                                               # (B, W)
    k = k_ref[0]
    qn = q / jnp.maximum(jnp.sqrt(jnp.sum(q * q, axis=1, keepdims=True)), 1e-12)
    kn = k / jnp.maximum(jnp.sqrt(jnp.sum(k * k, axis=1, keepdims=True)), 1e-12)
    pos_ref[0] = jnp.sum(qn * kn, axis=1, keepdims=True) * inv_t          # (B, 1)
    neg_ref[0] = jnp.dot(qn, queue_ref[0],
                         preferred_element_type=jnp.float32) * inv_t      # (B, K)


# ---------------------------------------------------------------------------
# Pallas wrappers
# ---------------------------------------------------------------------------
def matmul(a, b, bias=None, relu=False):
    """(M,K) @ (K,N) (+bias) (+ReLU): bf16 operands, f32 accumulate on the MXU."""
    M, K = a.shape
    _, N = b.shape
    tm, Mp = _tile_and_pad(M, 512, 8)
    tk, Kp = _tile_and_pad(K, 1024, 128)
    tn, Np = _tile_and_pad(N, 512, 128)

    a16 = a.astype(jnp.bfloat16)
    b16 = b.astype(jnp.bfloat16)
    if (Mp, Kp) != (M, K):
        a16 = jnp.pad(a16, ((0, Mp - M), (0, Kp - K)))
    if (Kp, Np) != (K, N):
        b16 = jnp.pad(b16, ((0, Kp - K), (0, Np - N)))

    has_bias = bias is not None
    ins = [a16, b16]
    in_specs = [pl.BlockSpec((tm, tk), lambda i, j, k: (i, k)),
                pl.BlockSpec((tk, tn), lambda i, j, k: (k, j))]
    if has_bias:
        bias_p = bias.astype(jnp.float32)
        if Np != N:
            bias_p = jnp.pad(bias_p, (0, Np - N))
        ins.append(bias_p.reshape(1, Np))
        in_specs.append(pl.BlockSpec((1, tn), lambda i, j, k: (0, j)))

    out = pl.pallas_call(
        functools.partial(_mm_kernel, relu=relu, has_bias=has_bias),
        out_shape=jax.ShapeDtypeStruct((Mp, Np), jnp.float32),
        grid_spec=pltpu.PrefetchScalarGridSpec(
            num_scalar_prefetch=0,
            grid=(Mp // tm, Np // tn, Kp // tk),
            in_specs=in_specs,
            out_specs=pl.BlockSpec((tm, tn), lambda i, j, k: (i, j)),
            scratch_shapes=[pltpu.VMEM((tm, tn), jnp.float32)],
        ),
        compiler_params=pltpu.CompilerParams(
            dimension_semantics=("parallel", "parallel", "arbitrary"),
            vmem_limit_bytes=MM_VMEM_LIMIT),
    )(*ins)
    if (Mp, Np) != (M, N):
        out = out[:M, :N]
    return out


def batchnorm(x, gamma, beta, residual=None, relu=False, groups=1):
    """Training-mode BatchNorm2d with per-group batch stats, fused residual add + ReLU.

    Stats (mean/var) are small XLA reductions; the full-tensor normalize pass runs in a
    gridded Pallas kernel (double-buffered tiles, 128-lane packing for narrow channels).
    """
    N, H, W, C = x.shape
    G = groups
    Mg = (N // G) * H * W
    xg = x.reshape(G, Mg, C)
    mean = jnp.mean(xg, axis=1, keepdims=True)                          # (G,1,C)
    var = jnp.mean(jnp.square(xg - mean), axis=1, keepdims=True)        # biased, like torch train BN
    scale = gamma.reshape(1, 1, C) * jax.lax.rsqrt(var + BN_EPS)        # (G,1,C)
    shift = beta.reshape(1, 1, C) - mean * scale                        # (G,1,C)

    # lane-pack narrow channel dims (C=64) into 128-wide slabs
    f = 1
    if C < 128 and 128 % C == 0 and Mg % (128 // C) == 0:
        f = 128 // C
    Cw, Mw = C * f, Mg // f
    xw = xg.reshape(G, Mw, Cw)
    sw = jnp.tile(scale, (1, 1, f))
    tw = jnp.tile(shift, (1, 1, f))
    has_res = residual is not None
    rw = residual.reshape(G, Mw, Cw) if has_res else None

    tm, Mp = _tile_and_pad(Mw, 512, 8)
    if Mp != Mw:
        xw = jnp.pad(xw, ((0, 0), (0, Mp - Mw), (0, 0)))
        if has_res:
            rw = jnp.pad(rw, ((0, 0), (0, Mp - Mw), (0, 0)))

    ins = [xw, sw, tw]
    in_specs = [pl.BlockSpec((1, tm, Cw), lambda g, m: (g, m, 0)),
                pl.BlockSpec((1, 1, Cw), lambda g, m: (g, 0, 0)),
                pl.BlockSpec((1, 1, Cw), lambda g, m: (g, 0, 0))]
    if has_res:
        ins.append(rw)
        in_specs.append(pl.BlockSpec((1, tm, Cw), lambda g, m: (g, m, 0)))

    y = pl.pallas_call(
        functools.partial(_affine_kernel, relu=relu, has_res=has_res),
        out_shape=jax.ShapeDtypeStruct((G, Mp, Cw), jnp.float32),
        grid_spec=pltpu.PrefetchScalarGridSpec(
            num_scalar_prefetch=0,
            grid=(G, Mp // tm),
            in_specs=in_specs,
            out_specs=pl.BlockSpec((1, tm, Cw), lambda g, m: (g, m, 0)),
        ),
        compiler_params=pltpu.CompilerParams(
            dimension_semantics=("parallel", "parallel")),
    )(*ins)
    if Mp != Mw:
        y = y[:, :Mw]
    return y.reshape(N, H, W, C)


def _extract_patches(x, kh, kw, stride, pad):
    """im2col glue: (N,H,W,C) -> (N,OH,OW,kh*kw,C)."""
    N, H, W, C = x.shape
    xp = jnp.pad(x, ((0, 0), (pad, pad), (pad, pad), (0, 0)))
    OH = (H + 2 * pad - kh) // stride + 1
    OW = (W + 2 * pad - kw) // stride + 1
    taps = []
    for i in range(kh):
        for j in range(kw):
            taps.append(xp[:, i:i + stride * OH:stride, j:j + stride * OW:stride, :])
    return jnp.stack(taps, axis=3), OH, OW


def conv2d(x, w, stride=1, pad=0):
    """NHWC convolution, no bias (matches nn.Conv2d(bias=False)); bf16 matmul on the MXU."""
    # TODO(synk): fold the kh*kw taps into the matmul reduction grid (Element-offset /
    # strided BlockSpecs) to avoid the im2col materialization entirely; kept bf16 im2col
    # here for lowering robustness (bf16 already halves the duplicated bytes).
    kh, kw, cin, cout = w.shape
    N = x.shape[0]
    if kh == 1 and kw == 1 and pad == 0:
        xs = x[:, ::stride, ::stride, :]
        _, OH, OW, _ = xs.shape
        cols = xs.astype(jnp.bfloat16).reshape(N * OH * OW, cin)
    else:
        patches, OH, OW = _extract_patches(x.astype(jnp.bfloat16), kh, kw, stride, pad)
        cols = patches.reshape(N * OH * OW, kh * kw * cin)
    out = matmul(cols, w.reshape(kh * kw * cin, cout))
    return out.reshape(N, OH, OW, cout)


def maxpool_3x3_s2_p1(x):
    """3x3/stride-2/pad-1 max-pool as a running max over the 9 taps (XLA glue; no 9x buffer)."""
    N, H, W, C = x.shape
    xp = jnp.pad(x, ((0, 0), (1, 1), (1, 1), (0, 0)), constant_values=-jnp.inf)
    OH = (H + 2 - 3) // 2 + 1
    OW = (W + 2 - 3) // 2 + 1
    r = None
    for i in range(3):
        for j in range(3):
            t = xp[:, i:i + 2 * OH:2, j:j + 2 * OW:2, :]
            r = t if r is None else jnp.maximum(r, t)
    return r


def compute_logits(q, k, queue, T):
    """q,k: (B, n, W); queue: (n, W, K) -> (B, n, 1+K) logits already divided by T."""
    B, n, W = q.shape
    K = queue.shape[2]
    qt = jnp.transpose(q, (1, 0, 2))
    kt = jnp.transpose(k, (1, 0, 2))
    pos, neg = pl.pallas_call(
        functools.partial(_logits_kernel, inv_t=1.0 / T),
        out_shape=(jax.ShapeDtypeStruct((n, B, 1), jnp.float32),
                   jax.ShapeDtypeStruct((n, B, K), jnp.float32)),
        grid_spec=pltpu.PrefetchScalarGridSpec(
            num_scalar_prefetch=0,
            grid=(n,),
            in_specs=[
                pl.BlockSpec((1, B, W), lambda i: (i, 0, 0)),
                pl.BlockSpec((1, B, W), lambda i: (i, 0, 0)),
                pl.BlockSpec((1, W, K), lambda i: (i, 0, 0)),
            ],
            out_specs=[pl.BlockSpec((1, B, 1), lambda i: (i, 0, 0)),
                       pl.BlockSpec((1, B, K), lambda i: (i, 0, 0))],
        ),
        compiler_params=pltpu.CompilerParams(dimension_semantics=("parallel",)),
    )(qt, kt, queue)
    return jnp.concatenate([jnp.transpose(pos, (1, 0, 2)),
                            jnp.transpose(neg, (1, 0, 2))], axis=2)


# ---------------------------------------------------------------------------
# Network forward (JAX glue orchestrating the Pallas kernels)
# ---------------------------------------------------------------------------
def basic_block_forward(p, x, groups):
    out = conv2d(x, p['conv1_w'], stride=p['stride'], pad=1)
    out = batchnorm(out, p['bn1_g'], p['bn1_b'], relu=True, groups=groups)
    out = conv2d(out, p['conv2_w'], stride=1, pad=1)
    if 'down_w' in p:
        identity = conv2d(x, p['down_w'], stride=p['stride'], pad=0)
        identity = batchnorm(identity, p['down_g'], p['down_b'], groups=groups)
    else:
        identity = x
    return batchnorm(out, p['bn2_g'], p['bn2_b'], residual=identity, relu=True, groups=groups)


def bottleneck_forward(p, x, groups):
    out = conv2d(x, p['conv1_w'])
    out = batchnorm(out, p['bn1_g'], p['bn1_b'], relu=True, groups=groups)
    out = conv2d(out, p['conv2_w'], stride=p['stride'], pad=1)
    out = batchnorm(out, p['bn2_g'], p['bn2_b'], relu=True, groups=groups)
    out = conv2d(out, p['conv3_w'])
    if 'down_w' in p:
        identity = conv2d(x, p['down_w'], stride=p['stride'], pad=0)
        identity = batchnorm(identity, p['down_g'], p['down_b'], groups=groups)
    else:
        identity = x
    return batchnorm(out, p['bn3_g'], p['bn3_b'], residual=identity, relu=True, groups=groups)


def block_forward(p, x, groups):
    return bottleneck_forward(p, x, groups) if 'conv3_w' in p else basic_block_forward(p, x, groups)


def moresnet_forward(enc, x, is_global, groups):
    """MoResnet._forward_impl on `groups` independent stats-groups stacked along batch.

    Returns (groups * B, 4, num_classes); rows are group-major (all of group 0 first).
    BatchNorm statistics are computed per group, so the result is identical to running
    each group through the encoder separately while streaming the weights only once.
    """
    x = conv2d(x, enc['conv1_w'], stride=2, pad=3)
    x = batchnorm(x, enc['bn1_g'], enc['bn1_b'], relu=True, groups=groups)
    x = maxpool_3x3_s2_p1(x)
    mlps = enc['global_mlps'] if is_global else enc['local_mlps']
    reps = []
    for layer_params, mlp in zip(enc['layers'], mlps):
        for bp in layer_params:
            x = block_forward(bp, x, groups)
        n_img, _, _, c = x.shape
        pooled = jnp.mean(x, axis=(1, 2))                       # AdaptiveAvgPool2d((1,1)) + flatten
        if is_global:
            feat = pooled                                       # rearrange with n=1 is identity
        else:
            b = n_img // (9 * groups)                           # '(n b) c h w -> b (n c) h w', n=9
            feat = pooled.reshape(groups, 9, b, c).transpose(0, 2, 1, 3).reshape(groups * b, 9 * c)
        h = matmul(feat, mlp['w1'], mlp['b1'], relu=True)
        reps.append(matmul(h, mlp['w2'], mlp['b2']))
    return jnp.stack(reps, axis=1)


def resnet_forward(params, inputs):
    """DetCo ResNet.forward — returns (logits, labels)."""
    T = params['T']
    B = inputs[0].shape[0]

    def nhwc(a):                                                # PyTorch NCHW -> kernel NHWC
        return jnp.transpose(a, (0, 2, 3, 1))

    # Batch the query and key encoder passes: [q-views ; k-views] along the batch axis,
    # with per-group BN stats so numerics match separate passes.
    glb = jnp.concatenate([inputs[0], inputs[1]], axis=0)       # (2B, 3, 32, 32)
    loc = jnp.concatenate(inputs[2:20], axis=0)                 # (18B, 3, 16, 16): [loc_q(9B); loc_k(9B)]

    enc = params['enc']
    # _momentum_update_key_encoder: encoder_k params were copied from encoder_q at init,
    # so the EMA update is the identity and encoder_k reuses the same weights.
    global_qk = moresnet_forward(enc, nhwc(glb), True, groups=2)    # (2B, 4, num_classes)
    local_qk = moresnet_forward(enc, nhwc(loc), False, groups=2)    # (2B, 4, num_classes)

    q = jnp.concatenate([global_qk[:B], local_qk[:B]], axis=1)      # (B, 8, num_classes)
    k = jnp.concatenate([global_qk[B:], local_qk[B:]], axis=1)      # (B, 8, num_classes)

    queue = params['queue']                                     # (8, num_classes, K), L2-normalized
    # main (n=8) and cross (n=4) logits in one parallel-gridded Pallas call (n=12 blocks)
    q12 = jnp.concatenate([q, q[:, 4:]], axis=1)
    k12 = jnp.concatenate([k, k[:, :4]], axis=1)
    queue12 = jnp.concatenate([queue, queue[:4]], axis=0)
    logits = compute_logits(q12, k12, queue12, T)               # (B, 12, 1+K)
    labels = jnp.zeros(logits.shape[:2], dtype=jnp.int32)       # torch.long -> int32 (x64 disabled)
    # TODO(synk): _dequeue_and_enqueue (concat_all_gather + queue buffer mutation) is
    # distributed training-state bookkeeping and does not affect the returned outputs.
    return logits, labels


# ---------------------------------------------------------------------------
# Deterministic parameter initialization (shapes from the module __init__)
# ---------------------------------------------------------------------------
def _kaiming_conv(key, kh, kw, cin, cout):
    fan_out = kh * kw * cout
    return math.sqrt(2.0 / fan_out) * jax.random.normal(key, (kh, kw, cin, cout), jnp.float32)


def _linear(key, din, dout):
    kw, kb = jax.random.split(key)
    bound = 1.0 / math.sqrt(din)
    w = jax.random.uniform(kw, (din, dout), jnp.float32, -bound, bound)
    b = jax.random.uniform(kb, (dout,), jnp.float32, -bound, bound)
    return w, b


def _init_block(key, block, inplanes, planes, stride, downsample):
    ks = jax.random.split(key, 4)
    if block == 'basic':
        out_ch = planes
        p = {'stride': stride,
             'conv1_w': _kaiming_conv(ks[0], 3, 3, inplanes, planes),
             'bn1_g': jnp.ones(planes), 'bn1_b': jnp.zeros(planes),
             'conv2_w': _kaiming_conv(ks[1], 3, 3, planes, planes),
             'bn2_g': jnp.ones(planes), 'bn2_b': jnp.zeros(planes)}
    else:                                                       # bottleneck
        width = planes
        out_ch = planes * 4
        p = {'stride': stride,
             'conv1_w': _kaiming_conv(ks[0], 1, 1, inplanes, width),
             'bn1_g': jnp.ones(width), 'bn1_b': jnp.zeros(width),
             'conv2_w': _kaiming_conv(ks[1], 3, 3, width, width),
             'bn2_g': jnp.ones(width), 'bn2_b': jnp.zeros(width),
             'conv3_w': _kaiming_conv(ks[2], 1, 1, width, out_ch),
             'bn3_g': jnp.ones(out_ch), 'bn3_b': jnp.zeros(out_ch)}
    if downsample:
        p['down_w'] = _kaiming_conv(ks[3], 1, 1, inplanes, out_ch)
        p['down_g'] = jnp.ones(out_ch)
        p['down_b'] = jnp.zeros(out_ch)
    return p


def init_resnet_params(key, block='basic', layers=(1, 1, 1, 1),
                       num_classes=128, K=256, n=8):
    exp = 1 if block == 'basic' else 4
    keys = jax.random.split(key, 16)
    enc = {'conv1_w': _kaiming_conv(keys[0], 7, 7, 3, 64),
           'bn1_g': jnp.ones(64), 'bn1_b': jnp.zeros(64)}

    inplanes = 64
    layer_params = []
    for li, (planes, blocks, stride) in enumerate(zip((64, 128, 256, 512), layers, (1, 2, 2, 2))):
        bkeys = jax.random.split(keys[1 + li], blocks)
        downsample = (stride != 1) or (inplanes != planes * exp)
        blk = [_init_block(bkeys[0], block, inplanes, planes, stride, downsample)]
        inplanes = planes * exp
        for bi in range(1, blocks):
            blk.append(_init_block(bkeys[bi], block, inplanes, planes, 1, False))
        layer_params.append(blk)
    enc['layers'] = layer_params

    gmlps, lmlps = [], []
    init_in = 64 * exp
    for i in range(4):
        c = init_in * 2 ** i
        k1, k2, k3, k4 = jax.random.split(keys[5 + i], 4)
        w1, b1 = _linear(k1, c, c)
        w2, b2 = _linear(k2, c, num_classes)
        gmlps.append({'w1': w1, 'b1': b1, 'w2': w2, 'b2': b2})
        w1, b1 = _linear(k3, 9 * c, 9 * c)
        w2, b2 = _linear(k4, 9 * c, num_classes)
        lmlps.append({'w1': w1, 'b1': b1, 'w2': w2, 'b2': b2})
    enc['global_mlps'] = gmlps
    enc['local_mlps'] = lmlps

    queue = jax.random.normal(keys[10], (n, num_classes, K), jnp.float32)
    queue = queue / jnp.maximum(jnp.linalg.norm(queue, axis=1, keepdims=True), 1e-12)
    return {'enc': enc, 'queue': queue, 'T': 0.07, 'm': 0.999}


# ---------------------------------------------------------------------------
if __name__ == "__main__":
    key = jax.random.PRNGKey(0)
    pk, ik = jax.random.split(key)
    B, num_classes, K = 2, 128, 256
    params = init_resnet_params(pk, block='basic', layers=(1, 1, 1, 1),
                                num_classes=num_classes, K=K)

    in_keys = jax.random.split(ik, 20)
    # inputs[0:2]: two global views (B,3,32,32); inputs[2:20]: 9+9 local crops (B,3,16,16)
    inputs = [jax.random.normal(in_keys[i], (B, 3, 32, 32), jnp.float32) for i in range(2)]
    inputs += [jax.random.normal(in_keys[i], (B, 3, 16, 16), jnp.float32) for i in range(2, 20)]

    logits, labels = resnet_forward(params, inputs)
    jax.block_until_ready(logits)
    assert logits.shape == (B, 12, 1 + K)
    assert labels.shape == (B, 12)
    print("KERNEL_OK")
</pallas_src>

<mosaic_0001>
module attributes {stable_mosaic.version = 11 : i64} {
  func.func @_mm_kernel(%arg0: i32, %arg1: i32, %arg2: i32, %arg3: memref<512x256xbf16, #tpu.memory_space<vmem>>, %arg4: memref<256x128xbf16, #tpu.memory_space<vmem>>, %arg5: memref<512x128xf32, #tpu.memory_space<vmem>>, %arg6: memref<512x128xf32, #tpu.memory_space<vmem>>) attributes {dimension_semantics = [#tpu.dimension_semantics<parallel>, #tpu.dimension_semantics<parallel>, #tpu.dimension_semantics<arbitrary>], iteration_bounds = array<i64: 2, 1, 1>, scalar_prefetch = 0 : i64, scratch_operands = 1 : i64, tpu.core_type = #tpu.core_type<tc>, window_params = [{transform_indices = @transform_0, window_bounds = array<i64: 512, 256>}, {transform_indices = @transform_1, window_bounds = array<i64: 256, 128>}, {transform_indices = @transform_2, window_bounds = array<i64: 512, 128>}]} {
    %c0_i32 = arith.constant 0 : i32
    %0 = arith.cmpi eq, %arg2, %c0_i32 : i32
    %1 = arith.extui %0 : i1 to i32
    %c0_i32_0 = arith.constant 0 : i32
    %2 = arith.cmpi ne, %1, %c0_i32_0 : i32
    scf.if %2 {
      %cst_10 = arith.constant 0.000000e+00 : f32
      %12 = vector.broadcast %cst_10 : f32 to vector<512x128xf32>
      %c0_11 = arith.constant 0 : index
      %c0_12 = arith.constant 0 : index
      %13 = vector.load %arg6[%c0_11, %c0_12] : memref<512x128xf32, #tpu.memory_space<vmem>>, vector<512x128xf32>
      tpu.vector_store %arg6[%c0_11, %c0_12], %12 {strides = array<i32>} : memref<512x128xf32, #tpu.memory_space<vmem>>, vector<512x128xf32>,
    } else {
    }
    %c0 = arith.constant 0 : index
    %c0_1 = arith.constant 0 : index
    %3 = vector.load %arg6[%c0, %c0_1] : memref<512x128xf32, #tpu.memory_space<vmem>>, vector<512x128xf32>
    %c0_2 = arith.constant 0 : index
    %c0_3 = arith.constant 0 : index
    %4 = vector.load %arg3[%c0_2, %c0_3] : memref<512x256xbf16, #tpu.memory_space<vmem>>, vector<512x256xbf16>
    %c0_4 = arith.constant 0 : index
    %c0_5 = arith.constant 0 : index
    %5 = vector.load %arg4[%c0_4, %c0_5] : memref<256x128xbf16, #tpu.memory_space<vmem>>, vector<256x128xbf16>
    %cst = arith.constant dense<0.000000e+00> : vector<512x128xf32>
    %6 = tpu.matmul %4, %5, %cst {dimension_numbers = #tpu.dot_dimension_numbers<[1], [0], [0], [1], [0, 0, 1, 1], [], []>} : vector<512x256xbf16>, vector<256x128xbf16>, vector<512x128xf32> -> vector<512x128xf32>
    %7 = arith.addf %3, %6 : vector<512x128xf32>
    %c0_6 = arith.constant 0 : index
    %c0_7 = arith.constant 0 : index
    %8 = vector.load %arg6[%c0_6, %c0_7] : memref<512x128xf32, #tpu.memory_space<vmem>>, vector<512x128xf32>
    tpu.vector_store %arg6[%c0_6, %c0_7], %7 {strides = array<i32>} : memref<512x128xf32, #tpu.memory_space<vmem>>, vector<512x128xf32>,
    %c0_i32_8 = arith.constant 0 : i32
    %9 = arith.cmpi eq, %arg2, %c0_i32_8 : i32
    %10 = arith.extui %9 : i1 to i32
    %c0_i32_9 = arith.constant 0 : i32
    %11 = arith.cmpi ne, %10, %c0_i32_9 : i32
    scf.if %11 {
      %c0_10 = arith.constant 0 : index
      %c0_11 = arith.constant 0 : index
      %12 = vector.load %arg6[%c0_10, %c0_11] : memref<512x128xf32, #tpu.memory_space<vmem>>, vector<512x128xf32>
      %c0_12 = arith.constant 0 : index
      %c0_13 = arith.constant 0 : index
      %13 = vector.load %arg5[%c0_12, %c0_13] : memref<512x128xf32, #tpu.memory_space<vmem>>, vector<512x128xf32>
      tpu.vector_store %arg5[%c0_12, %c0_13], %12 {strides = array<i32>} : memref<512x128xf32, #tpu.memory_space<vmem>>, vector<512x128xf32>,
    } else {
    }
    return
  }
  func.func @transform_0(%arg0: i32, %arg1: i32, %arg2: i32) -> (i32, i32) {
    %c0_i32 = arith.constant 0 : i32
    return %arg0, %arg2 : i32, i32
  }
  func.func @transform_1(%arg0: i32, %arg1: i32, %arg2: i32) -> (i32, i32) {
    %c0_i32 = arith.constant 0 : i32
    return %arg2, %arg1 : i32, i32
  }
  func.func @transform_2(%arg0: i32, %arg1: i32, %arg2: i32) -> (i32, i32) {
    %c0_i32 = arith.constant 0 : i32
    return %arg0, %arg1 : i32, i32
  }
}

</mosaic_0001>

<llo_original>
// kernel: tpu_custom_call.1
$region0: #{tpu_custom_call.1}
  #allocation0 [shape = 'u32[]', space=smem, size = 0x4, offset = 0x4, fixed_abs, tag = 'smem constant byte address 0x4 - core index']
  #allocation1 [shape = 'u32[72,128]{1,0:T(1,128)}', space=vmem, size = 0x9000, scoped, tag = 'internal scratch']
  #allocation2 [shape = 'f32[512,128]{1,0:T(8,128)}', space=vmem, size = 0x40000, scoped, tag = 'scratch operand']
  %s0 = inlined_call_operand.hbm [shape: bf16[1024,256], index: 0, kind: input, shape index: {}]
  %s1 = inlined_call_operand.hbm [shape: bf16[256,128], index: 1, kind: input, shape index: {}]
  %s2 = inlined_call_operand.hbm [shape: f32[1024,128], index: 2, kind: output, shape index: {}]
  %s3 = sld [smem:[#allocation0]]
  $region57: #{tpu_custom_call.1} parent=0
    _
  %s5 = ssub.s32 1, %s3
  %s6 = scalar_select 0, %s5, %s3
  $region1: #{tpu_custom_call.1} parent=0
    #allocation3 [shape = 'u8[524288]{0}', space=vmem, size = 0x80000, scoped, tag = 'input window, operand 0']
    #allocation4 [shape = 's32[2]{0}', space=sflag, size = 0x8, scoped, tag = 'scoped memory for tpu_custom_call.1']
    #allocation5 [shape = 's32[2]{0}', space=sflag, size = 0x8, scoped, tag = 'scoped memory for tpu_custom_call.1']
    #allocation6 [shape = 'u8[65536]{0}', space=vmem, size = 0x10000, scoped, tag = 'input window, operand 1, single buffered']
    #allocation7 [shape = 's32[1]{0}', space=sflag, size = 0x4, scoped, tag = 'scoped memory for tpu_custom_call.1']
    #allocation8 [shape = 'u8[524288]{0}', space=vmem, size = 0x80000, scoped, tag = 'output window, operand 0']
    %7 = vsyncpa [#allocation4], 0
    %s8 = scalar_lea.sflag [#allocation4], 1
    %9 = vsyncpa %s8, 0
    %10 = vsyncpa [#allocation7], 0
    %11 = vsyncpa [#allocation5], 0
    %s12 = scalar_lea.sflag [#allocation5], 1
    %13 = vsyncpa %s12, 0
    loop: start=0, step=1, limit=4
    $region2: #{tpu_custom_call.1} parent=1 // loop_pre_header
      _
    $region3: #{tpu_custom_call.1} parent=1 // loop_header
      %s15 = sphi 0, %s19
      %p16 = scmp.ge.s32.totalorder %s15, 4
      %s22 = sphi 0, %s41
      %s23 = sphi 0, %s37
      %s24 = sphi 0, %s33
      %s25 = sphi 0, %s22
      %s26 = sphi 0, %s23
      %s27 = sphi 0, %s24
      %s28 = sphi 0, %s25
      %s29 = sphi 0, %s26
      %s30 = sphi 0, %s27
      %s46 = sphi 0, %s48
      %s49 = sphi 0, %s46
      %s50 = sphi 0, %s49
      %s66 = sphi 0, %s50
      %s74 = sphi 0, %s76
      %s77 = sphi 0, %s74
      %s78 = sphi 0, %s77
      %s94 = sphi 0, %s78
      %s102 = sphi 0, %s104
      %s105 = sphi 0, %s102
      %s106 = sphi 0, %s105
      %s122 = sphi 0, %s106
    $region4: #{tpu_custom_call.1} parent=1 // loop_header_branch
      %18 = sbr.rel (%p16) target = $region8
    $region5: #{tpu_custom_call.1} parent=1 // loop_body
      %s20 = ssub.s32 %s15, 1
      %s21 = ssub.s32 %s15, 2
      %s31 = sadd.s32 1, %s24
      %p32 = scmp.ge.s32.totalorder %s31, 1
      %s33 = scalar_select %p32, 0, %s31
      %s34 = sadd.s32 1, %s23
      %s35 = scalar_select %p32, %s34, %s23
      %p36 = scmp.ge.s32.totalorder %s35, 1
      %s37 = scalar_select %p36, 0, %s35
      %s38 = sadd.s32 1, %s22
      %s39 = scalar_select %p36, %s38, %s22
      %p40 = scmp.ge.s32.totalorder %s39, 2
      %s41 = scalar_select %p40, 0, %s39
      %s42 = ssub.s32 %s22, %s41
      %s43 = ssub.s32 %s24, %s33
      %s44 = sor.u32 %s42, %s43
      %p45 = scmp.eq.s32.totalorder %s44, 0
      %s47 = sadd.s32 %s46, 1
      %s48 = scalar_select %p45, %s46, %s47
      %p51 = pneg %p45
      %p52 = scmp.eq.s32.totalorder %s15, 1
      %p53 = por %p51, %p52
      %p54 = scmp.ne.s32.totalorder %s46, %s49
      %p55 = scmp.eq.s32.totalorder %s15, 0
      %p56 = por %p54, %p55
      %p57 = scmp.ne.s32.totalorder %s46, %s49
      %p58 = scmp.eq.s32.totalorder %s20, 1
      %p59 = por %p57, %p58
      %p60 = scmp.ne.s32.totalorder %s49, %s50
      %p61 = scmp.eq.s32.totalorder %s20, 0
      %p62 = por %p60, %p61
      %p63 = scmp.ne.s32.totalorder %s49, %s50
      %p64 = scmp.eq.s32.totalorder %s21, 1
      %p65 = por %p63, %p64
      %p67 = scmp.ne.s32.totalorder %s50, %s66
      %p68 = scmp.eq.s32.totalorder %s21, 0
      %p69 = por %p67, %p68
      %s70 = ssub.s32 %s24, %s33
      %s71 = ssub.s32 %s23, %s37
      %s72 = sor.u32 %s70, %s71
      %p73 = scmp.eq.s32.totalorder %s72, 0
      %s75 = sadd.s32 %s74, 1
      %s76 = scalar_select %p73, %s74, %s75
      %p79 = pneg %p73
      %p80 = scmp.eq.s32.totalorder %s15, 1
      %p81 = por %p79, %p80
      %p82 = scmp.ne.s32.totalorder %s74, %s77
      %p83 = scmp.eq.s32.totalorder %s15, 0
      %p84 = por %p82, %p83
      %p85 = scmp.ne.s32.totalorder %s74, %s77
      %p86 = scmp.eq.s32.totalorder %s20, 1
      %p87 = por %p85, %p86
      %p88 = scmp.ne.s32.totalorder %s77, %s78
      %p89 = scmp.eq.s32.totalorder %s20, 0
      %p90 = por %p88, %p89
      %p91 = scmp.ne.s32.totalorder %s77, %s78
      %p92 = scmp.eq.s32.totalorder %s21, 1
      %p93 = por %p91, %p92
      %p95 = scmp.ne.s32.totalorder %s78, %s94
      %p96 = scmp.eq.s32.totalorder %s21, 0
      %p97 = por %p95, %p96
      %s98 = ssub.s32 %s22, %s41
      %s99 = ssub.s32 %s23, %s37
      %s100 = sor.u32 %s98, %s99
      %p101 = scmp.eq.s32.totalorder %s100, 0
      %s103 = sadd.s32 %s102, 1
      %s104 = scalar_select %p101, %s102, %s103
      %p107 = pneg %p101
      %p108 = scmp.eq.s32.totalorder %s15, 1
      %p109 = por %p107, %p108
      %p110 = scmp.ne.s32.totalorder %s102, %s105
      %p111 = scmp.eq.s32.totalorder %s15, 0
      %p112 = por %p110, %p111
      %p113 = scmp.ne.s32.totalorder %s102, %s105
      %p114 = scmp.eq.s32.totalorder %s20, 1
      %p115 = por %p113, %p114
      %p116 = scmp.ne.s32.totalorder %s105, %s106
      %p117 = scmp.eq.s32.totalorder %s20, 0
      %p118 = por %p116, %p117
      %p119 = scmp.ne.s32.totalorder %s105, %s106
      %p120 = scmp.eq.s32.totalorder %s21, 1
      %p121 = por %p119, %p120
      %p123 = scmp.ne.s32.totalorder %s106, %s122
      %p124 = scmp.eq.s32.totalorder %s21, 0
      %p125 = por %p123, %p124
      %p126 = scmp.le.s32.totalorder 1, %s15
      %p127 = scmp.lt.s32.totalorder %s15, 3
      %p128 = pnand %p126, %p127
      %p129 = pneg %p128
      // Predicated region
      $region9: #{tpu_custom_call.1} parent=5 // pred_check
        _
      $region10: #{tpu_custom_call.1} parent=5 // pred_check_branch
        %131 = sbr.rel (%p128) target = $region12
      $region11: #{tpu_custom_call.1} parent=5 // pred_region
        %s132 = ssub.s32 %s15, 1
        // Predicated region
        $region13: #{tpu_custom_call.1} parent=11 // pred_check
          %p133 = pneg %p90
        $region14: #{tpu_custom_call.1} parent=11 // pred_check_branch
          %135 = sbr.rel (%p133) target = $region16
        $region15: #{tpu_custom_call.1} parent=11 // pred_region
          %s136 = smul.u32 32, %s27
          %138 = vsyncadd [#allocation7], 0
          %s139 = sadd.s32 %s26, %s136
          %s140 = smul.addr %s139, 4
          %s141 = scalar_lea.hbm %s1, %s140
          %s142 = sshll.u32 %s141, 4
          %s143 = int_to_ptr.hbm [resolvable:$true] %s142
          %s144 = sshll.u32 [#allocation6], 4
          %s145 = int_to_ptr.vmem [resolvable:$true] %s144
          %150 = dma.hbm_to_vmem [thread:$0]  %s143, 2048, %s145, [#allocation7], 64, 64, 4
        $region16: #{tpu_custom_call.1} parent=11 // pred_fallthru
          _
      $region12: #{tpu_custom_call.1} parent=5 // pred_fallthru
        _
      %p151 = scmp.lt.s32.totalorder %s15, 2
      // Predicated region
      $region17: #{tpu_custom_call.1} parent=5 // pred_check
        %p152 = pneg %p151
      $region18: #{tpu_custom_call.1} parent=5 // pred_check_branch
        %154 = sbr.rel (%p152) target = $region20
      $region19: #{tpu_custom_call.1} parent=5 // pred_region
        // Predicated region
        $region21: #{tpu_custom_call.1} parent=19 // pred_check
          %p155 = pneg %p56
        $region22: #{tpu_custom_call.1} parent=19 // pred_check_branch
          %157 = sbr.rel (%p155) target = $region24
        $region23: #{tpu_custom_call.1} parent=19 // pred_region
          %s158 = sand.u32 %s46, 1
          %s159 = scalar_lea.sflag [#allocation4], %s158
          %s160 = sand.u32 %s46, 1
          %s161 = smul.addr %s160, 512
          %s162 = scalar_lea.vmem [#allocation3], %s161
          %s163 = smul.u32 64, %s22
          %s164 = smul.u32 2, %s24
          %166 = vsyncadd %s159, 0
          %s167 = smul.addr %s163, 2
          %s168 = sadd.s32 %s164, %s167
          %s169 = smul.addr %s168, 4
          %s170 = scalar_lea.hbm %s0, %s169
          %s171 = sshll.u32 %s170, 4
          %s172 = int_to_ptr.hbm [resolvable:$true] %s171
          %s173 = sshll.u32 %s162, 4
          %s174 = int_to_ptr.vmem [resolvable:$true] %s173
          %179 = dma.hbm_to_vmem [thread:$0]  %s172, 8192, %s174, %s159, 128, 128, 8
        $region24: #{tpu_custom_call.1} parent=19 // pred_fallthru
          _
      $region20: #{tpu_custom_call.1} parent=5 // pred_fallthru
        _
      %p180 = scmp.le.s32.totalorder 1, %s15
      %p181 = scmp.lt.s32.totalorder %s15, 3
      %p182 = pnand %p180, %p181
      %p183 = pneg %p182
      // Predicated region
      $region25: #{tpu_custom_call.1} parent=5 // pred_check
        _
      $region26: #{tpu_custom_call.1} parent=5 // pred_check_branch
        %185 = sbr.rel (%p182) target = $region28
      $region27: #{tpu_custom_call.1} parent=5 // pred_region
        %s186 = ssub.s32 %s15, 1
        %s187 = sand.u32 %s49, 1
        %s188 = scalar_lea.sflag [#allocation4], %s187
        %s189 = sand.u32 %s49, 1
        %s190 = smul.addr %s189, 512
        %s191 = scalar_lea.vmem [#allocation3], %s190
        // Predicated region
        $region29: #{tpu_custom_call.1} parent=27 // pred_check
          %p192 = pneg %p62
        $region30: #{tpu_custom_call.1} parent=27 // pred_check_branch
          %194 = sbr.rel (%p192) target = $region32
        $region31: #{tpu_custom_call.1} parent=27 // pred_region
          %196 = dma.done %s188, 8192
        $region32: #{tpu_custom_call.1} parent=27 // pred_fallthru
          _
        // Predicated region
        $region33: #{tpu_custom_call.1} parent=27 // pred_check
          %p197 = pneg %p90
        $region34: #{tpu_custom_call.1} parent=27 // pred_check_branch
          %199 = sbr.rel (%p197) target = $region36
        $region35: #{tpu_custom_call.1} parent=27 // pred_region
          %201 = dma.done [#allocation7], 2048
        $region36: #{tpu_custom_call.1} parent=27 // pred_fallthru
          _
        %s202 = sand.u32 %s49, 1
        %s203 = scalar_lea.sflag [#allocation4], %s202
        %s204 = sand.u32 %s49, 1
        %s205 = smul.addr %s204, 512
        %s206 = scalar_lea.vmem [#allocation3], %s205
        %p207 = pneg %p62
        %p208 = pneg %p59
        %p209 = pneg %p90
        %p210 = pneg %p87
        %p211 = pneg %p118
        %p212 = pneg %p115
        %s213 = sand.u32 %s105, 1
        %s214 = scalar_lea.sflag [#allocation5], %s213
        %s215 = sand.u32 %s105, 1
        %s216 = smul.addr %s215, 512
        %s217 = scalar_lea.vmem [#allocation8], %s216
        %s218 = smul.u32 64, %s25
        %s219 = smul.u32 2, %s27
        %s220 = smul.u32 32, %s27
        %s221 = smul.u32 64, %s25
        %p222 = scmp.eq.s32.totalorder %s27, 0
        // Predicated region
        $region37: #{tpu_custom_call.1} parent=27 // pred_check
          %p223 = pneg %p222
        $region38: #{tpu_custom_call.1} parent=27 // pred_check_branch
          %225 = sbr.rel (%p223) target = $region40
        $region39: #{tpu_custom_call.1} parent=27 // pred_region
          %226 = vst [vmem:[#allocation2] sm:$0xff] 0.0
          %227 = vst [vmem:[#allocation2 + $0x8] sm:$0xff] 0.0
          %228 = vst [vmem:[#allocation2 + $0x10] sm:$0xff] 0.0
          %229 = vst [vmem:[#allocation2 + $0x18] sm:$0xff] 0.0
          %230 = vst [vmem:[#allocation2 + $0x20] sm:$0xff] 0.0
          %231 = vst [vmem:[#allocation2 + $0x28] sm:$0xff] 0.0
          %232 = vst [vmem:[#allocation2 + $0x30] sm:$0xff] 0.0
          %233 = vst [vmem:[#allocation2 + $0x38] sm:$0xff] 0.0
          %234 = vst [vmem:[#allocation2 + $0x40] sm:$0xff] 0.0
          %235 = vst [vmem:[#allocation2 + $0x48] sm:$0xff] 0.0
          %236 = vst [vmem:[#allocation2 + $0x50] sm:$0xff] 0.0
          %237 = vst [vmem:[#allocation2 + $0x58] sm:$0xff] 0.0
          %238 = vst [vmem:[#allocation2 + $0x60] sm:$0xff] 0.0
          %239 = vst [vmem:[#allocation2 + $0x68] sm:$0xff] 0.0
          %240 = vst [vmem:[#allocation2 + $0x70] sm:$0xff] 0.0
          %241 = vst [vmem:[#allocation2 + $0x78] sm:$0xff] 0.0
          %242 = vst [vmem:[#allocation2 + $0x80] sm:$0xff] 0.0
          %243 = vst [vmem:[#allocation2 + $0x88] sm:$0xff] 0.0
          %244 = vst [vmem:[#allocation2 + $0x90] sm:$0xff] 0.0
          %245 = vst [vmem:[#allocation2 + $0x98] sm:$0xff] 0.0
          %246 = vst [vmem:[#allocation2 + $0xa0] sm:$0xff] 0.0
          %247 = vst [vmem:[#allocation2 + $0xa8] sm:$0xff] 0.0
          %248 = vst [vmem:[#allocation2 + $0xb0] sm:$0xff] 0.0
          %249 = vst [vmem:[#allocation2 + $0xb8] sm:$0xff] 0.0
          %250 = vst [vmem:[#allocation2 + $0xc0] sm:$0xff] 0.0
          %251 = vst [vmem:[#allocation2 + $0xc8] sm:$0xff] 0.0
          %252 = vst [vmem:[#allocation2 + $0xd0] sm:$0xff] 0.0
          %253 = vst [vmem:[#allocation2 + $0xd8] sm:$0xff] 0.0
          %254 = vst [vmem:[#allocation2 + $0xe0] sm:$0xff] 0.0
          %255 = vst [vmem:[#allocation2 + $0xe8] sm:$0xff] 0.0
          %256 = vst [vmem:[#allocation2 + $0xf0] sm:$0xff] 0.0
          %257 = vst [vmem:[#allocation2 + $0xf8] sm:$0xff] 0.0
          %258 = vst [vmem:[#allocation2 + $0x100] sm:$0xff] 0.0
          %259 = vst [vmem:[#allocation2 + $0x108] sm:$0xff] 0.0
          %260 = vst [vmem:[#allocation2 + $0x110] sm:$0xff] 0.0
          %261 = vst [vmem:[#allocation2 + $0x118] sm:$0xff] 0.0
          %262 = vst [vmem:[#allocation2 + $0x120] sm:$0xff] 0.0
          %263 = vst [vmem:[#allocation2 + $0x128] sm:$0xff] 0.0
          %264 = vst [vmem:[#allocation2 + $0x130] sm:$0xff] 0.0
          %265 = vst [vmem:[#allocation2 + $0x138] sm:$0xff] 0.0
          %266 = vst [vmem:[#allocation2 + $0x140] sm:$0xff] 0.0
          %267 = vst [vmem:[#allocation2 + $0x148] sm:$0xff] 0.0
          %268 = vst [vmem:[#allocation2 + $0x150] sm:$0xff] 0.0
          %269 = vst [vmem:[#allocation2 + $0x158] sm:$0xff] 0.0
          %270 = vst [vmem:[#allocation2 + $0x160] sm:$0xff] 0.0
          %271 = vst [vmem:[#allocation2 + $0x168] sm:$0xff] 0.0
          %272 = vst [vmem:[#allocation2 + $0x170] sm:$0xff] 0.0
          %273 = vst [vmem:[#allocation2 + $0x178] sm:$0xff] 0.0
          %274 = vst [vmem:[#allocation2 + $0x180] sm:$0xff] 0.0
          %275 = vst [vmem:[#allocation2 + $0x188] sm:$0xff] 0.0
          %276 = vst [vmem:[#allocation2 + $0x190] sm:$0xff] 0.0
          %277 = vst [vmem:[#allocation2 + $0x198] sm:$0xff] 0.0
          %278 = vst [vmem:[#allocation2 + $0x1a0] sm:$0xff] 0.0
          %279 = vst [vmem:[#allocation2 + $0x1a8] sm:$0xff] 0.0
          %280 = vst [vmem:[#allocation2 + $0x1b0] sm:$0xff] 0.0
          %281 = vst [vmem:[#allocation2 + $0x1b8] sm:$0xff] 0.0
          %282 = vst [vmem:[#allocation2 + $0x1c0] sm:$0xff] 0.0
          %283 = vst [vmem:[#allocation2 + $0x1c8] sm:$0xff] 0.0
          %284 = vst [vmem:[#allocation2 + $0x1d0] sm:$0xff] 0.0
          %285 = vst [vmem:[#allocation2 + $0x1d8] sm:$0xff] 0.0
          %286 = vst [vmem:[#allocation2 + $0x1e0] sm:$0xff] 0.0
          %287 = vst [vmem:[#allocation2 + $0x1e8] sm:$0xff] 0.0
          %288 = vst [vmem:[#allocation2 + $0x1f0] sm:$0xff] 0.0
          %289 = vst [vmem:[#allocation2 + $0x1f8] sm:$0xff] 0.0
        $region40: #{tpu_custom_call.1} parent=27 // pred_fallthru
          _
        %v290 = vld [vmem:[#allocation2] sm:$0xff]
        %v291 = vld [vmem:[#allocation2 + $0x8] sm:$0xff]
        %v292 = vld [vmem:[#allocation2 + $0x10] sm:$0xff]
        %v293 = vld [vmem:[#allocation2 + $0x18] sm:$0xff]
        %v294 = vld [vmem:[#allocation2 + $0x20] sm:$0xff]
        %v295 = vld [vmem:[#allocation2 + $0x28] sm:$0xff]
        %v296 = vld [vmem:[#allocation2 + $0x30] sm:$0xff]
        %v297 = vld [vmem:[#allocation2 + $0x38] sm:$0xff]
        %v298 = vld [vmem:[#allocation2 + $0x40] sm:$0xff]
        %v299 = vld [vmem:[#allocation2 + $0x48] sm:$0xff]
        %v300 = vld [vmem:[#allocation2 + $0x50] sm:$0xff]
        %v301 = vld [vmem:[#allocation2 + $0x58] sm:$0xff]
        %v302 = vld [vmem:[#allocation2 + $0x60] sm:$0xff]
        %v303 = vld [vmem:[#allocation2 + $0x68] sm:$0xff]
        %v304 = vld [vmem:[#allocation2 + $0x70] sm:$0xff]
        %v305 = vld [vmem:[#allocation2 + $0x78] sm:$0xff]
        %v306 = vld [vmem:[#allocation2 + $0x80] sm:$0xff]
        %v307 = vld [vmem:[#allocation2 + $0x88] sm:$0xff]
        %v308 = vld [vmem:[#allocation2 + $0x90] sm:$0xff]
        %v309 = vld [vmem:[#allocation2 + $0x98] sm:$0xff]
        %v310 = vld [vmem:[#allocation2 + $0xa0] sm:$0xff]
        %v311 = vld [vmem:[#allocation2 + $0xa8] sm:$0xff]
        %v312 = vld [vmem:[#allocation2 + $0xb0] sm:$0xff]
        %v313 = vld [vmem:[#allocation2 + $0xb8] sm:$0xff]
        %v314 = vld [vmem:[#allocation2 + $0xc0] sm:$0xff]
        %v315 = vld [vmem:[#allocation2 + $0xc8] sm:$0xff]
        %v316 = vld [vmem:[#allocation2 + $0xd0] sm:$0xff]
        %v317 = vld [vmem:[#allocation2 + $0xd8] sm:$0xff]
        %v318 = vld [vmem:[#allocation2 + $0xe0] sm:$0xff]
        %v319 = vld [vmem:[#allocation2 + $0xe8] sm:$0xff]
        %v320 = vld [vmem:[#allocation2 + $0xf0] sm:$0xff]
        %v321 = vld [vmem:[#allocation2 + $0xf8] sm:$0xff]
        %v322 = vld [vmem:[#allocation2 + $0x100] sm:$0xff]
        %v323 = vld [vmem:[#allocation2 + $0x108] sm:$0xff]
        %v324 = vld [vmem:[#allocation2 + $0x110] sm:$0xff]
        %v325 = vld [vmem:[#allocation2 + $0x118] sm:$0xff]
        %v326 = vld [vmem:[#allocation2 + $0x120] sm:$0xff]
        %v327 = vld [vmem:[#allocation2 + $0x128] sm:$0xff]
        %v328 = vld [vmem:[#allocation2 + $0x130] sm:$0xff]
        %v329 = vld [vmem:[#allocation2 + $0x138] sm:$0xff]
        %v330 = vld [vmem:[#allocation2 + $0x140] sm:$0xff]
        %v331 = vld [vmem:[#allocation2 + $0x148] sm:$0xff]
        %v332 = vld [vmem:[#allocation2 + $0x150] sm:$0xff]
        %v333 = vld [vmem:[#allocation2 + $0x158] sm:$0xff]
        %v334 = vld [vmem:[#allocation2 + $0x160] sm:$0xff]
        %v335 = vld [vmem:[#allocation2 + $0x168] sm:$0xff]
        %v336 = vld [vmem:[#allocation2 + $0x170] sm:$0xff]
        %v337 = vld [vmem:[#allocation2 + $0x178] sm:$0xff]
        %v338 = vld [vmem:[#allocation2 + $0x180] sm:$0xff]
        %v339 = vld [vmem:[#allocation2 + $0x188] sm:$0xff]
        %v340 = vld [vmem:[#allocation2 + $0x190] sm:$0xff]
        %v341 = vld [vmem:[#allocation2 + $0x198] sm:$0xff]
        %v342 = vld [vmem:[#allocation2 + $0x1a0] sm:$0xff]
        %v343 = vld [vmem:[#allocation2 + $0x1a8] sm:$0xff]
        %v344 = vld [vmem:[#allocation2 + $0x1b0] sm:$0xff]
        %v345 = vld [vmem:[#allocation2 + $0x1b8] sm:$0xff]
        %v346 = vld [vmem:[#allocation2 + $0x1c0] sm:$0xff]
        %v347 = vld [vmem:[#allocation2 + $0x1c8] sm:$0xff]
        %v348 = vld [vmem:[#allocation2 + $0x1d0] sm:$0xff]
        %v349 = vld [vmem:[#allocation2 + $0x1d8] sm:$0xff]
        %v350 = vld [vmem:[#allocation2 + $0x1e0] sm:$0xff]
        %v351 = vld [vmem:[#allocation2 + $0x1e8] sm:$0xff]
        %v352 = vld [vmem:[#allocation2 + $0x1f0] sm:$0xff]
        %v353 = vld [vmem:[#allocation2 + $0x1f8] sm:$0xff]
        %v354 = vld [vmem:[%s191] sm:$0xff]
        %v355 = vld [vmem:[%s191 + $0x8] sm:$0xff]
        %v356 = vld [vmem:[%s191 + $0x10] sm:$0xff]
        %v357 = vld [vmem:[%s191 + $0x18] sm:$0xff]
        %v358 = vld [vmem:[%s191 + $0x20] sm:$0xff]
        %v359 = vld [vmem:[%s191 + $0x28] sm:$0xff]
        %v360 = vld [vmem:[%s191 + $0x30] sm:$0xff]
        %v361 = vld [vmem:[%s191 + $0x38] sm:$0xff]
        %v362 = vld [vmem:[%s191 + $0x40] sm:$0xff]
        %v363 = vld [vmem:[%s191 + $0x48] sm:$0xff]
        %v364 = vld [vmem:[%s191 + $0x50] sm:$0xff]
        %v365 = vld [vmem:[%s191 + $0x58] sm:$0xff]
        %v366 = vld [vmem:[%s191 + $0x60] sm:$0xff]
        %v367 = vld [vmem:[%s191 + $0x68] sm:$0xff]
        %v368 = vld [vmem:[%s191 + $0x70] sm:$0xff]
        %v369 = vld [vmem:[%s191 + $0x78] sm:$0xff]
        %v370 = vld [vmem:[%s191 + $0x80] sm:$0xff]
        %v371 = vld [vmem:[%s191 + $0x88] sm:$0xff]
        %v372 = vld [vmem:[%s191 + $0x90] sm:$0xff]
        %v373 = vld [vmem:[%s191 + $0x98] sm:$0xff]
        %v374 = vld [vmem:[%s191 + $0xa0] sm:$0xff]
        %v375 = vld [vmem:[%s191 + $0xa8] sm:$0xff]
        %v376 = vld [vmem:[%s191 + $0xb0] sm:$0xff]
        %v377 = vld [vmem:[%s191 + $0xb8] sm:$0xff]
        %v378 = vld [vmem:[%s191 + $0xc0] sm:$0xff]
        %v379 = vld [vmem:[%s191 + $0xc8] sm:$0xff]
        %v380 = vld [vmem:[%s191 + $0xd0] sm:$0xff]
        %v381 = vld [vmem:[%s191 + $0xd8] sm:$0xff]
        %v382 = vld [vmem:[%s191 + $0xe0] sm:$0xff]
        %v383 = vld [vmem:[%s191 + $0xe8] sm:$0xff]
        %v384 = vld [vmem:[%s191 + $0xf0] sm:$0xff]
        %v385 = vld [vmem:[%s191 + $0xf8] sm:$0xff]
        %v386 = vld [vmem:[%s191 + $0x100] sm:$0xff]
        %v387 = vld [vmem:[%s191 + $0x108] sm:$0xff]
        %v388 = vld [vmem:[%s191 + $0x110] sm:$0xff]
        %v389 = vld [vmem:[%s191 + $0x118] sm:$0xff]
        %v390 = vld [vmem:[%s191 + $0x120] sm:$0xff]
        %v391 = vld [vmem:[%s191 + $0x128] sm:$0xff]
        %v392 = vld [vmem:[%s191 + $0x130] sm:$0xff]
        %v393 = vld [vmem:[%s191 + $0x138] sm:$0xff]
        %v394 = vld [vmem:[%s191 + $0x140] sm:$0xff]
        %v395 = vld [vmem:[%s191 + $0x148] sm:$0xff]
        %v396 = vld [vmem:[%s191 + $0x150] sm:$0xff]
        %v397 = vld [vmem:[%s191 + $0x158] sm:$0xff]
        %v398 = vld [vmem:[%s191 + $0x160] sm:$0xff]
        %v399 = vld [vmem:[%s191 + $0x168] sm:$0xff]
        %v400 = vld [vmem:[%s191 + $0x170] sm:$0xff]
        %v401 = vld [vmem:[%s191 + $0x178] sm:$0xff]
        %v402 = vld [vmem:[%s191 + $0x180] sm:$0xff]
        %v403 = vld [vmem:[%s191 + $0x188] sm:$0xff]
        %v404 = vld [vmem:[%s191 + $0x190] sm:$0xff]
        %v405 = vld [vmem:[%s191 + $0x198] sm:$0xff]
        %v406 = vld [vmem:[%s191 + $0x1a0] sm:$0xff]
        %v407 = vld [vmem:[%s191 + $0x1a8] sm:$0xff]
        %v408 = vld [vmem:[%s191 + $0x1b0] sm:$0xff]
        %v409 = vld [vmem:[%s191 + $0x1b8] sm:$0xff]
        %v410 = vld [vmem:[%s191 + $0x1c0] sm:$0xff]
        %v411 = vld [vmem:[%s191 + $0x1c8] sm:$0xff]
        %v412 = vld [vmem:[%s191 + $0x1d0] sm:$0xff]
        %v413 = vld [vmem:[%s191 + $0x1d8] sm:$0xff]
        %v414 = vld [vmem:[%s191 + $0x1e0] sm:$0xff]
        %v415 = vld [vmem:[%s191 + $0x1e8] sm:$0xff]
        %v416 = vld [vmem:[%s191 + $0x1f0] sm:$0xff]
        %v417 = vld [vmem:[%s191 + $0x1f8] sm:$0xff]
        %v418 = vld [vmem:[#allocation6] sm:$0xf]
        %v419 = vld [vmem:[#allocation6 + $0x4] sm:$0xf]
        %v420 = vld [vmem:[#allocation6 + $0x8] sm:$0xf]
        %v421 = vld [vmem:[#allocation6 + $0xc] sm:$0xf]
        %v422 = vld [vmem:[#allocation6 + $0x10] sm:$0xf]
        %v423 = vld [vmem:[#allocation6 + $0x14] sm:$0xf]
        %v424 = vld [vmem:[#allocation6 + $0x18] sm:$0xf]
        %v425 = vld [vmem:[#allocation6 + $0x1c] sm:$0xf]
        %v426 = vld [vmem:[#allocation6 + $0x20] sm:$0xf]
        %v427 = vld [vmem:[#allocation6 + $0x24] sm:$0xf]
        %v428 = vld [vmem:[#allocation6 + $0x28] sm:$0xf]
        %v429 = vld [vmem:[#allocation6 + $0x2c] sm:$0xf]
        %v430 = vld [vmem:[#allocation6 + $0x30] sm:$0xf]
        %v431 = vld [vmem:[#allocation6 + $0x34] sm:$0xf]
        %v432 = vld [vmem:[#allocation6 + $0x38] sm:$0xf]
        %v433 = vld [vmem:[#allocation6 + $0x3c] sm:$0xf]
        %v434 = vld [vmem:[#allocation6 + $0x40] sm:$0xf]
        %v435 = vld [vmem:[#allocation6 + $0x44] sm:$0xf]
        %v436 = vld [vmem:[#allocation6 + $0x48] sm:$0xf]
        %v437 = vld [vmem:[#allocation6 + $0x4c] sm:$0xf]
        %v438 = vld [vmem:[#allocation6 + $0x50] sm:$0xf]
        %v439 = vld [vmem:[#allocation6 + $0x54] sm:$0xf]
        %v440 = vld [vmem:[#allocation6 + $0x58] sm:$0xf]
        %v441 = vld [vmem:[#allocation6 + $0x5c] sm:$0xf]
        %v442 = vld [vmem:[#allocation6 + $0x60] sm:$0xf]
        %v443 = vld [vmem:[#allocation6 + $0x64] sm:$0xf]
        %v444 = vld [vmem:[#allocation6 + $0x68] sm:$0xf]
        %v445 = vld [vmem:[#allocation6 + $0x6c] sm:$0xf]
        %v446 = vld [vmem:[#allocation6 + $0x70] sm:$0xf]
        %v447 = vld [vmem:[#allocation6 + $0x74] sm:$0xf]
        %v448 = vld [vmem:[#allocation6 + $0x78] sm:$0xf]
        %v449 = vld [vmem:[#allocation6 + $0x7c] sm:$0xf]
        %v514 = vunpack.c.l.b16 %v354
        %v515 = vunpack.c.h.b16 %v354
        %v516 = vunpack.c.l.b16 %v355
        %v517 = vunpack.c.h.b16 %v355
        %v518 = vunpack.c.l.b16 %v356
        %v519 = vunpack.c.h.b16 %v356
        %v520 = vunpack.c.l.b16 %v357
        %v521 = vunpack.c.h.b16 %v357
        %v522 = vunpack.c.l.b16 %v358
        %v523 = vunpack.c.h.b16 %v358
        %v524 = vunpack.c.l.b16 %v359
        %v525 = vunpack.c.h.b16 %v359
        %v526 = vunpack.c.l.b16 %v360
        %v527 = vunpack.c.h.b16 %v360
        %v528 = vunpack.c.l.b16 %v361
        %v529 = vunpack.c.h.b16 %v361
        %v530 = vunpack.c.l.b16 %v362
        %v531 = vunpack.c.h.b16 %v362
        %v532 = vunpack.c.l.b16 %v363
        %v533 = vunpack.c.h.b16 %v363
        %v534 = vunpack.c.l.b16 %v364
        %v535 = vunpack.c.h.b16 %v364
        %v536 = vunpack.c.l.b16 %v365
        %v537 = vunpack.c.h.b16 %v365
        %v538 = vunpack.c.l.b16 %v366
        %v539 = vunpack.c.h.b16 %v366
        %v540 = vunpack.c.l.b16 %v367
        %v541 = vunpack.c.h.b16 %v367
        %v542 = vunpack.c.l.b16 %v368
        %v543 = vunpack.c.h.b16 %v368
        %v544 = vunpack.c.l.b16 %v369
        %v545 = vunpack.c.h.b16 %v369
        %v546 = vunpack.c.l.b16 %v370
        %v547 = vunpack.c.h.b16 %v370
        %v548 = vunpack.c.l.b16 %v371
        %v549 = vunpack.c.h.b16 %v371
        %v550 = vunpack.c.l.b16 %v372
        %v551 = vunpack.c.h.b16 %v372
        %v552 = vunpack.c.l.b16 %v373
        %v553 = vunpack.c.h.b16 %v373
        %v554 = vunpack.c.l.b16 %v374
        %v555 = vunpack.c.h.b16 %v374
        %v556 = vunpack.c.l.b16 %v375
        %v557 = vunpack.c.h.b16 %v375
        %v558 = vunpack.c.l.b16 %v376
        %v559 = vunpack.c.h.b16 %v376
        %v560 = vunpack.c.l.b16 %v377
        %v561 = vunpack.c.h.b16 %v377
        %v562 = vunpack.c.l.b16 %v378
        %v563 = vunpack.c.h.b16 %v378
        %v564 = vunpack.c.l.b16 %v379
        %v565 = vunpack.c.h.b16 %v379
        %v566 = vunpack.c.l.b16 %v380
        %v567 = vunpack.c.h.b16 %v380
        %v568 = vunpack.c.l.b16 %v381
        %v569 = vunpack.c.h.b16 %v381
        %v570 = vunpack.c.l.b16 %v382
        %v571 = vunpack.c.h.b16 %v382
        %v572 = vunpack.c.l.b16 %v383
        %v573 = vunpack.c.h.b16 %v383
        %v574 = vunpack.c.l.b16 %v384
        %v575 = vunpack.c.h.b16 %v384
        %v576 = vunpack.c.l.b16 %v385
        %v577 = vunpack.c.h.b16 %v385
        %v578 = vunpack.c.l.b16 %v386
        %v579 = vunpack.c.h.b16 %v386
        %v580 = vunpack.c.l.b16 %v387
        %v581 = vunpack.c.h.b16 %v387
        %v582 = vunpack.c.l.b16 %v388
        %v583 = vunpack.c.h.b16 %v388
        %v584 = vunpack.c.l.b16 %v389
        %v585 = vunpack.c.h.b16 %v389
        %v586 = vunpack.c.l.b16 %v390
        %v587 = vunpack.c.h.b16 %v390
        %v588 = vunpack.c.l.b16 %v391
        %v589 = vunpack.c.h.b16 %v391
        %v590 = vunpack.c.l.b16 %v392
        %v591 = vunpack.c.h.b16 %v392
        %v592 = vunpack.c.l.b16 %v393
        %v593 = vunpack.c.h.b16 %v393
        %v594 = vunpack.c.l.b16 %v394
        %v595 = vunpack.c.h.b16 %v394
        %v596 = vunpack.c.l.b16 %v395
        %v597 = vunpack.c.h.b16 %v395
        %v598 = vunpack.c.l.b16 %v396
        %v599 = vunpack.c.h.b16 %v396
        %v600 = vunpack.c.l.b16 %v397
        %v601 = vunpack.c.h.b16 %v397
        %v602 = vunpack.c.l.b16 %v398
        %v603 = vunpack.c.h.b16 %v398
        %v604 = vunpack.c.l.b16 %v399
        %v605 = vunpack.c.h.b16 %v399
        %v606 = vunpack.c.l.b16 %v400
        %v607 = vunpack.c.h.b16 %v400
        %v608 = vunpack.c.l.b16 %v401
        %v609 = vunpack.c.h.b16 %v401
        %v610 = vunpack.c.l.b16 %v402
        %v611 = vunpack.c.h.b16 %v402
        %v612 = vunpack.c.l.b16 %v403
        %v613 = vunpack.c.h.b16 %v403
        %v614 = vunpack.c.l.b16 %v404
        %v615 = vunpack.c.h.b16 %v404
        %v616 = vunpack.c.l.b16 %v405
        %v617 = vunpack.c.h.b16 %v405
        %v618 = vunpack.c.l.b16 %v406
        %v619 = vunpack.c.h.b16 %v406
        %v620 = vunpack.c.l.b16 %v407
        %v621 = vunpack.c.h.b16 %v407
        %v622 = vunpack.c.l.b16 %v408
        %v623 = vunpack.c.h.b16 %v408
        %v624 = vunpack.c.l.b16 %v409
        %v625 = vunpack.c.h.b16 %v409
        %v626 = vunpack.c.l.b16 %v410
        %v627 = vunpack.c.h.b16 %v410
        %v628 = vunpack.c.l.b16 %v411
        %v629 = vunpack.c.h.b16 %v411
        %v630 = vunpack.c.l.b16 %v412
        %v631 = vunpack.c.h.b16 %v412
        %v632 = vunpack.c.l.b16 %v413
        %v633 = vunpack.c.h.b16 %v413
        %v634 = vunpack.c.l.b16 %v414
        %v635 = vunpack.c.h.b16 %v414
        %v636 = vunpack.c.l.b16 %v415
        %v637 = vunpack.c.h.b16 %v415
        %v638 = vunpack.c.l.b16 %v416
        %v639 = vunpack.c.h.b16 %v416
        %v640 = vunpack.c.l.b16 %v417
        %v641 = vunpack.c.h.b16 %v417
        %v642 = vpack.c.b16 %v516, %v514
        %v643 = vpack.c.b16 %v517, %v515
        %v644 = vpack.c.b16 %v520, %v518
        %v645 = vpack.c.b16 %v521, %v519
        %v646 = vpack.c.b16 %v524, %v522
        %v647 = vpack.c.b16 %v525, %v523
        %v648 = vpack.c.b16 %v528, %v526
        %v649 = vpack.c.b16 %v529, %v527
        %v650 = vpack.c.b16 %v532, %v530
        %v651 = vpack.c.b16 %v533, %v531
        %v652 = vpack.c.b16 %v536, %v534
        %v653 = vpack.c.b16 %v537, %v535
        %v654 = vpack.c.b16 %v540, %v538
        %v655 = vpack.c.b16 %v541, %v539
        %v656 = vpack.c.b16 %v544, %v542
        %v657 = vpack.c.b16 %v545, %v543
        %v658 = vpack.c.b16 %v548, %v546
        %v659 = vpack.c.b16 %v549, %v547
        %v660 = vpack.c.b16 %v552, %v550
        %v661 = vpack.c.b16 %v553, %v551
        %v662 = vpack.c.b16 %v556, %v554
        %v663 = vpack.c.b16 %v557, %v555
        %v664 = vpack.c.b16 %v560, %v558
        %v665 = vpack.c.b16 %v561, %v559
        %v666 = vpack.c.b16 %v564, %v562
        %v667 = vpack.c.b16 %v565, %v563
        %v668 = vpack.c.b16 %v568, %v566
        %v669 = vpack.c.b16 %v569, %v567
        %v670 = vpack.c.b16 %v572, %v570
        %v671 = vpack.c.b16 %v573, %v571
        %v672 = vpack.c.b16 %v576, %v574
        %v673 = vpack.c.b16 %v577, %v575
        %v674 = vpack.c.b16 %v580, %v578
        %v675 = vpack.c.b16 %v581, %v579
        %v676 = vpack.c.b16 %v584, %v582
        %v677 = vpack.c.b16 %v585, %v583
        %v678 = vpack.c.b16 %v588, %v586
        %v679 = vpack.c.b16 %v589, %v587
        %v680 = vpack.c.b16 %v592, %v590
        %v681 = vpack.c.b16 %v593, %v591
        %v682 = vpack.c.b16 %v596, %v594
        %v683 = vpack.c.b16 %v597, %v595
        %v684 = vpack.c.b16 %v600, %v598
        %v685 = vpack.c.b16 %v601, %v599
        %v686 = vpack.c.b16 %v604, %v602
        %v687 = vpack.c.b16 %v605, %v603
        %v688 = vpack.c.b16 %v608, %v606
        %v689 = vpack.c.b16 %v609, %v607
        %v690 = vpack.c.b16 %v612, %v610
        %v691 = vpack.c.b16 %v613, %v611
        %v692 = vpack.c.b16 %v616, %v614
        %v693 = vpack.c.b16 %v617, %v615
        %v694 = vpack.c.b16 %v620, %v618
        %v695 = vpack.c.b16 %v621, %v619
        %v696 = vpack.c.b16 %v624, %v622
        %v697 = vpack.c.b16 %v625, %v623
        %v698 = vpack.c.b16 %v628, %v626
        %v699 = vpack.c.b16 %v629, %v627
        %v700 = vpack.c.b16 %v632, %v630
        %v701 = vpack.c.b16 %v633, %v631
        %v702 = vpack.c.b16 %v636, %v634
        %v703 = vpack.c.b16 %v637, %v635
        %v704 = vpack.c.b16 %v640, %v638
        %v705 = vpack.c.b16 %v641, %v639
        %v802 = vunpack.c.l.b16 %v418
        %v803 = vunpack.c.l.b16 %v419
        %v804 = vunpack.c.l.b16 %v420
        %v805 = vunpack.c.l.b16 %v421
        %v806 = vunpack.c.l.b16 %v422
        %v807 = vunpack.c.l.b16 %v423
        %v808 = vunpack.c.l.b16 %v424
        %v809 = vunpack.c.l.b16 %v425
        %v810 = vunpack.c.l.b16 %v426
        %v811 = vunpack.c.l.b16 %v427
        %v812 = vunpack.c.l.b16 %v428
        %v813 = vunpack.c.l.b16 %v429
        %v814 = vunpack.c.l.b16 %v430
        %v815 = vunpack.c.l.b16 %v431
        %v816 = vunpack.c.l.b16 %v432
        %v817 = vunpack.c.l.b16 %v433
        %v818 = vunpack.c.l.b16 %v434
        %v819 = vunpack.c.l.b16 %v435
        %v820 = vunpack.c.l.b16 %v436
        %v821 = vunpack.c.l.b16 %v437
        %v822 = vunpack.c.l.b16 %v438
        %v823 = vunpack.c.l.b16 %v439
        %v824 = vunpack.c.l.b16 %v440
        %v825 = vunpack.c.l.b16 %v441
        %v826 = vunpack.c.l.b16 %v442
        %v827 = vunpack.c.l.b16 %v443
        %v828 = vunpack.c.l.b16 %v444
        %v829 = vunpack.c.l.b16 %v445
        %v830 = vunpack.c.l.b16 %v446
        %v831 = vunpack.c.l.b16 %v447
        %v832 = vunpack.c.l.b16 %v448
        %v833 = vunpack.c.l.b16 %v449
        %v834 = vpack.c.b16 %v803, %v802
        %v835 = vpack.c.b16 %v805, %v804
        %v836 = vpack.c.b16 %v807, %v806
        %v837 = vpack.c.b16 %v809, %v808
        %v838 = vpack.c.b16 %v811, %v810
        %v839 = vpack.c.b16 %v813, %v812
        %v840 = vpack.c.b16 %v815, %v814
        %v841 = vpack.c.b16 %v817, %v816
        %v842 = vpack.c.b16 %v819, %v818
        %v843 = vpack.c.b16 %v821, %v820
        %v844 = vpack.c.b16 %v823, %v822
        %v845 = vpack.c.b16 %v825, %v824
        %v846 = vpack.c.b16 %v827, %v826
        %v847 = vpack.c.b16 %v829, %v828
        %v848 = vpack.c.b16 %v831, %v830
        %v849 = vpack.c.b16 %v833, %v832
        %866 = vmatpush.bf16.msra.mxu0 %v841
        %867 = vmatpush.bf16.msra.mxu0 %v840
        %868 = vmatpush.bf16.msra.mxu0 %v839
        %869 = vmatpush.bf16.msra.mxu0 %v838
        %870 = vmatpush.bf16.msra.mxu0 %v837
        %871 = vmatpush.bf16.msra.mxu0 %v836
        %872 = vmatpush.bf16.msra.mxu0 %v835
        %873 = vmatpush.bf16.msra.mxu0 %v834
        %874 = vmatmul.bf16.gmra.mxu0 %v642
        %v875 = vpop.f32.mrf.mxu0
        %v876 = vadd.f32 0.0, %v875
        %v877 = vpop.f32.mrf.mxu0
        %v878 = vadd.f32 0.0, %v877
        %879 = vmatmul.bf16.gmra.mxu0 %v644
        %v880 = vpop.f32.mrf.mxu0
        %v881 = vadd.f32 0.0, %v880
        %v882 = vpop.f32.mrf.mxu0
        %v883 = vadd.f32 0.0, %v882
        %884 = vmatmul.bf16.gmra.mxu0 %v646
        %v885 = vpop.f32.mrf.mxu0
        %v886 = vadd.f32 0.0, %v885
        %v887 = vpop.f32.mrf.mxu0
        %v888 = vadd.f32 0.0, %v887
        %889 = vmatmul.bf16.gmra.mxu0 %v648
        %v890 = vpop.f32.mrf.mxu0
        %v891 = vadd.f32 0.0, %v890
        %v892 = vpop.f32.mrf.mxu0
        %v893 = vadd.f32 0.0, %v892
        %894 = vmatmul.bf16.gmra.mxu0 %v650
        %v895 = vpop.f32.mrf.mxu0
        %v896 = vadd.f32 0.0, %v895
        %v897 = vpop.f32.mrf.mxu0
        %v898 = vadd.f32 0.0, %v897
        %899 = vmatmul.bf16.gmra.mxu0 %v652
        %v900 = vpop.f32.mrf.mxu0
        %v901 = vadd.f32 0.0, %v900
        %v902 = vpop.f32.mrf.mxu0
        %v903 = vadd.f32 0.0, %v902
        %904 = vmatmul.bf16.gmra.mxu0 %v654
        %v905 = vpop.f32.mrf.mxu0
        %v906 = vadd.f32 0.0, %v905
        %v907 = vpop.f32.mrf.mxu0
        %v908 = vadd.f32 0.0, %v907
        %909 = vmatmul.bf16.gmra.mxu0 %v656
        %v910 = vpop.f32.mrf.mxu0
        %v911 = vadd.f32 0.0, %v910
        %v912 = vpop.f32.mrf.mxu0
        %v913 = vadd.f32 0.0, %v912
        %914 = vmatmul.bf16.gmra.mxu0 %v658
        %v915 = vpop.f32.mrf.mxu0
        %v916 = vadd.f32 0.0, %v915
        %v917 = vpop.f32.mrf.mxu0
        %v918 = vadd.f32 0.0, %v917
        %919 = vmatmul.bf16.gmra.mxu0 %v660
        %v920 = vpop.f32.mrf.mxu0
        %v921 = vadd.f32 0.0, %v920
        %v922 = vpop.f32.mrf.mxu0
        %v923 = vadd.f32 0.0, %v922
        %924 = vmatmul.bf16.gmra.mxu0 %v662
        %v925 = vpop.f32.mrf.mxu0
        %v926 = vadd.f32 0.0, %v925
        %v927 = vpop.f32.mrf.mxu0
        %v928 = vadd.f32 0.0, %v927
        %929 = vmatmul.bf16.gmra.mxu0 %v664
        %v930 = vpop.f32.mrf.mxu0
        %v931 = vadd.f32 0.0, %v930
        %v932 = vpop.f32.mrf.mxu0
        %v933 = vadd.f32 0.0, %v932
        %934 = vmatmul.bf16.gmra.mxu0 %v666
        %v935 = vpop.f32.mrf.mxu0
        %v936 = vadd.f32 0.0, %v935
        %v937 = vpop.f32.mrf.mxu0
        %v938 = vadd.f32 0.0, %v937
        %939 = vmatmul.bf16.gmra.mxu0 %v668
        %v940 = vpop.f32.mrf.mxu0
        %v941 = vadd.f32 0.0, %v940
        %v942 = vpop.f32.mrf.mxu0
        %v943 = vadd.f32 0.0, %v942
        %944 = vmatmul.bf16.gmra.mxu0 %v670
        %v945 = vpop.f32.mrf.mxu0
        %v946 = vadd.f32 0.0, %v945
        %v947 = vpop.f32.mrf.mxu0
        %v948 = vadd.f32 0.0, %v947
        %949 = vmatmul.bf16.gmra.mxu0 %v672
        %v950 = vpop.f32.mrf.mxu0
        %v951 = vadd.f32 0.0, %v950
        %v952 = vpop.f32.mrf.mxu0
        %v953 = vadd.f32 0.0, %v952
        %954 = vmatmul.bf16.gmra.mxu0 %v674
        %v955 = vpop.f32.mrf.mxu0
        %v956 = vadd.f32 0.0, %v955
        %v957 = vpop.f32.mrf.mxu0
        %v958 = vadd.f32 0.0, %v957
        %959 = vmatmul.bf16.gmra.mxu0 %v676
        %v960 = vpop.f32.mrf.mxu0
        %v961 = vadd.f32 0.0, %v960
        %v962 = vpop.f32.mrf.mxu0
        %v963 = vadd.f32 0.0, %v962
        %964 = vmatmul.bf16.gmra.mxu0 %v678
        %v965 = vpop.f32.mrf.mxu0
        %v966 = vadd.f32 0.0, %v965
        %v967 = vpop.f32.mrf.mxu0
        %v968 = vadd.f32 0.0, %v967
        %969 = vmatmul.bf16.gmra.mxu0 %v680
        %v970 = vpop.f32.mrf.mxu0
        %v971 = vadd.f32 0.0, %v970
        %v972 = vpop.f32.mrf.mxu0
        %v973 = vadd.f32 0.0, %v972
        %974 = vmatmul.bf16.gmra.mxu0 %v682
        %v975 = vpop.f32.mrf.mxu0
        %v976 = vadd.f32 0.0, %v975
        %v977 = vpop.f32.mrf.mxu0
        %v978 = vadd.f32 0.0, %v977
        %979 = vmatmul.bf16.gmra.mxu0 %v684
        %v980 = vpop.f32.mrf.mxu0
        %v981 = vadd.f32 0.0, %v980
        %v982 = vpop.f32.mrf.mxu0
        %v983 = vadd.f32 0.0, %v982
        %984 = vmatmul.bf16.gmra.mxu0 %v686
        %v985 = vpop.f32.mrf.mxu0
        %v986 = vadd.f32 0.0, %v985
        %v987 = vpop.f32.mrf.mxu0
        %v988 = vadd.f32 0.0, %v987
        %989 = vmatmul.bf16.gmra.mxu0 %v688
        %v990 = vpop.f32.mrf.mxu0
        %v991 = vadd.f32 0.0, %v990
        %v992 = vpop.f32.mrf.mxu0
        %v993 = vadd.f32 0.0, %v992
        %994 = vmatmul.bf16.gmra.mxu0 %v690
        %v995 = vpop.f32.mrf.mxu0
        %v996 = vadd.f32 0.0, %v995
        %v997 = vpop.f32.mrf.mxu0
        %v998 = vadd.f32 0.0, %v997
        %999 = vmatmul.bf16.gmra.mxu0 %v692
        %v1000 = vpop.f32.mrf.mxu0
        %v1001 = vadd.f32 0.0, %v1000
        %v1002 = vpop.f32.mrf.mxu0
        %v1003 = vadd.f32 0.0, %v1002
        %1004 = vmatmul.bf16.gmra.mxu0 %v694
        %v1005 = vpop.f32.mrf.mxu0
        %v1006 = vadd.f32 0.0, %v1005
        %v1007 = vpop.f32.mrf.mxu0
        %v1008 = vadd.f32 0.0, %v1007
        %1009 = vmatmul.bf16.gmra.mxu0 %v696
        %v1010 = vpop.f32.mrf.mxu0
        %v1011 = vadd.f32 0.0, %v1010
        %v1012 = vpop.f32.mrf.mxu0
        %v1013 = vadd.f32 0.0, %v1012
        %1014 = vmatmul.bf16.gmra.mxu0 %v698
        %v1015 = vpop.f32.mrf.mxu0
        %v1016 = vadd.f32 0.0, %v1015
        %v1017 = vpop.f32.mrf.mxu0
        %v1018 = vadd.f32 0.0, %v1017
        %1019 = vmatmul.bf16.gmra.mxu0 %v700
        %v1020 = vpop.f32.mrf.mxu0
        %v1021 = vadd.f32 0.0, %v1020
        %v1022 = vpop.f32.mrf.mxu0
        %v1023 = vadd.f32 0.0, %v1022
        %1024 = vmatmul.bf16.gmra.mxu0 %v702
        %v1025 = vpop.f32.mrf.mxu0
        %v1026 = vadd.f32 0.0, %v1025
        %v1027 = vpop.f32.mrf.mxu0
        %v1028 = vadd.f32 0.0, %v1027
        %1029 = vmatmul.bf16.gmra.mxu0 %v704
        %v1030 = vpop.f32.mrf.mxu0
        %v1031 = vadd.f32 0.0, %v1030
        %v1032 = vpop.f32.mrf.mxu0
        %v1033 = vadd.f32 0.0, %v1032
        %1034 = vdwg.mxu0
        %1035 = vmatpush.bf16.msra.mxu0 %v849
        %1036 = vmatpush.bf16.msra.mxu0 %v848
        %1037 = vmatpush.bf16.msra.mxu0 %v847
        %1038 = vmatpush.bf16.msra.mxu0 %v846
        %1039 = vmatpush.bf16.msra.mxu0 %v845
        %1040 = vmatpush.bf16.msra.mxu0 %v844
        %1041 = vmatpush.bf16.msra.mxu0 %v843
        %1042 = vmatpush.bf16.msra.mxu0 %v842
        %1043 = vmatmul.bf16.gmra.mxu0 %v643
        %v1044 = vpop.f32.mrf.mxu0
        %v1045 = vadd.f32 %v876, %v1044
        %v1046 = vpop.f32.mrf.mxu0
        %v1047 = vadd.f32 %v878, %v1046
        %1048 = vmatmul.bf16.gmra.mxu0 %v645
        %v1049 = vpop.f32.mrf.mxu0
        %v1050 = vadd.f32 %v881, %v1049
        %v1051 = vpop.f32.mrf.mxu0
        %v1052 = vadd.f32 %v883, %v1051
        %1053 = vmatmul.bf16.gmra.mxu0 %v647
        %v1054 = vpop.f32.mrf.mxu0
        %v1055 = vadd.f32 %v886, %v1054
        %v1056 = vpop.f32.mrf.mxu0
        %v1057 = vadd.f32 %v888, %v1056
        %1058 = vmatmul.bf16.gmra.mxu0 %v649
        %v1059 = vpop.f32.mrf.mxu0
        %v1060 = vadd.f32 %v891, %v1059
        %v1061 = vpop.f32.mrf.mxu0
        %v1062 = vadd.f32 %v893, %v1061
        %1063 = vmatmul.bf16.gmra.mxu0 %v651
        %v1064 = vpop.f32.mrf.mxu0
        %v1065 = vadd.f32 %v896, %v1064
        %v1066 = vpop.f32.mrf.mxu0
        %v1067 = vadd.f32 %v898, %v1066
        %1068 = vmatmul.bf16.gmra.mxu0 %v653
        %v1069 = vpop.f32.mrf.mxu0
        %v1070 = vadd.f32 %v901, %v1069
        %v1071 = vpop.f32.mrf.mxu0
        %v1072 = vadd.f32 %v903, %v1071
        %1073 = vmatmul.bf16.gmra.mxu0 %v655
        %v1074 = vpop.f32.mrf.mxu0
        %v1075 = vadd.f32 %v906, %v1074
        %v1076 = vpop.f32.mrf.mxu0
        %v1077 = vadd.f32 %v908, %v1076
        %1078 = vmatmul.bf16.gmra.mxu0 %v657
        %v1079 = vpop.f32.mrf.mxu0
        %v1080 = vadd.f32 %v911, %v1079
        %v1081 = vpop.f32.mrf.mxu0
        %v1082 = vadd.f32 %v913, %v1081
        %1083 = vmatmul.bf16.gmra.mxu0 %v659
        %v1084 = vpop.f32.mrf.mxu0
        %v1085 = vadd.f32 %v916, %v1084
        %v1086 = vpop.f32.mrf.mxu0
        %v1087 = vadd.f32 %v918, %v1086
        %1088 = vmatmul.bf16.gmra.mxu0 %v661
        %v1089 = vpop.f32.mrf.mxu0
        %v1090 = vadd.f32 %v921, %v1089
        %v1091 = vpop.f32.mrf.mxu0
        %v1092 = vadd.f32 %v923, %v1091
        %1093 = vmatmul.bf16.gmra.mxu0 %v663
        %v1094 = vpop.f32.mrf.mxu0
        %v1095 = vadd.f32 %v926, %v1094
        %v1096 = vpop.f32.mrf.mxu0
        %v1097 = vadd.f32 %v928, %v1096
        %1098 = vmatmul.bf16.gmra.mxu0 %v665
        %v1099 = vpop.f32.mrf.mxu0
        %v1100 = vadd.f32 %v931, %v1099
        %v1101 = vpop.f32.mrf.mxu0
        %v1102 = vadd.f32 %v933, %v1101
        %1103 = vmatmul.bf16.gmra.mxu0 %v667
        %v1104 = vpop.f32.mrf.mxu0
        %v1105 = vadd.f32 %v936, %v1104
        %v1106 = vpop.f32.mrf.mxu0
        %v1107 = vadd.f32 %v938, %v1106
        %1108 = vmatmul.bf16.gmra.mxu0 %v669
        %v1109 = vpop.f32.mrf.mxu0
        %v1110 = vadd.f32 %v941, %v1109
        %v1111 = vpop.f32.mrf.mxu0
        %v1112 = vadd.f32 %v943, %v1111
        %1113 = vmatmul.bf16.gmra.mxu0 %v671
        %v1114 = vpop.f32.mrf.mxu0
        %v1115 = vadd.f32 %v946, %v1114
        %v1116 = vpop.f32.mrf.mxu0
        %v1117 = vadd.f32 %v948, %v1116
        %1118 = vmatmul.bf16.gmra.mxu0 %v673
        %v1119 = vpop.f32.mrf.mxu0
        %v1120 = vadd.f32 %v951, %v1119
        %v1121 = vpop.f32.mrf.mxu0
        %v1122 = vadd.f32 %v953, %v1121
        %1123 = vmatmul.bf16.gmra.mxu0 %v675
        %v1124 = vpop.f32.mrf.mxu0
        %v1125 = vadd.f32 %v956, %v1124
        %v1126 = vpop.f32.mrf.mxu0
        %v1127 = vadd.f32 %v958, %v1126
        %1128 = vmatmul.bf16.gmra.mxu0 %v677
        %v1129 = vpop.f32.mrf.mxu0
        %v1130 = vadd.f32 %v961, %v1129
        %v1131 = vpop.f32.mrf.mxu0
        %v1132 = vadd.f32 %v963, %v1131
        %1133 = vmatmul.bf16.gmra.mxu0 %v679
        %v1134 = vpop.f32.mrf.mxu0
        %v1135 = vadd.f32 %v966, %v1134
        %v1136 = vpop.f32.mrf.mxu0
        %v1137 = vadd.f32 %v968, %v1136
        %1138 = vmatmul.bf16.gmra.mxu0 %v681
        %v1139 = vpop.f32.mrf.mxu0
        %v1140 = vadd.f32 %v971, %v1139
        %v1141 = vpop.f32.mrf.mxu0
        %v1142 = vadd.f32 %v973, %v1141
        %1143 = vmatmul.bf16.gmra.mxu0 %v683
        %v1144 = vpop.f32.mrf.mxu0
        %v1145 = vadd.f32 %v976, %v1144
        %v1146 = vpop.f32.mrf.mxu0
        %v1147 = vadd.f32 %v978, %v1146
        %1148 = vmatmul.bf16.gmra.mxu0 %v685
        %v1149 = vpop.f32.mrf.mxu0
        %v1150 = vadd.f32 %v981, %v1149
        %v1151 = vpop.f32.mrf.mxu0
        %v1152 = vadd.f32 %v983, %v1151
        %1153 = vmatmul.bf16.gmra.mxu0 %v687
        %v1154 = vpop.f32.mrf.mxu0
        %v1155 = vadd.f32 %v986, %v1154
        %v1156 = vpop.f32.mrf.mxu0
        %v1157 = vadd.f32 %v988, %v1156
        %1158 = vmatmul.bf16.gmra.mxu0 %v689
        %v1159 = vpop.f32.mrf.mxu0
        %v1160 = vadd.f32 %v991, %v1159
        %v1161 = vpop.f32.mrf.mxu0
        %v1162 = vadd.f32 %v993, %v1161
        %1163 = vmatmul.bf16.gmra.mxu0 %v691
        %v1164 = vpop.f32.mrf.mxu0
        %v1165 = vadd.f32 %v996, %v1164
        %v1166 = vpop.f32.mrf.mxu0
        %v1167 = vadd.f32 %v998, %v1166
        %1168 = vmatmul.bf16.gmra.mxu0 %v693
        %v1169 = vpop.f32.mrf.mxu0
        %v1170 = vadd.f32 %v1001, %v1169
        %v1171 = vpop.f32.mrf.mxu0
        %v1172 = vadd.f32 %v1003, %v1171
        %1173 = vmatmul.bf16.gmra.mxu0 %v695
        %v1174 = vpop.f32.mrf.mxu0
        %v1175 = vadd.f32 %v1006, %v1174
        %v1176 = vpop.f32.mrf.mxu0
        %v1177 = vadd.f32 %v1008, %v1176
        %1178 = vmatmul.bf16.gmra.mxu0 %v697
        %v1179 = vpop.f32.mrf.mxu0
        %v1180 = vadd.f32 %v1011, %v1179
        %v1181 = vpop.f32.mrf.mxu0
        %v1182 = vadd.f32 %v1013, %v1181
        %1183 = vmatmul.bf16.gmra.mxu0 %v699
        %v1184 = vpop.f32.mrf.mxu0
        %v1185 = vadd.f32 %v1016, %v1184
        %v1186 = vpop.f32.mrf.mxu0
        %v1187 = vadd.f32 %v1018, %v1186
        %1188 = vmatmul.bf16.gmra.mxu0 %v701
        %v1189 = vpop.f32.mrf.mxu0
        %v1190 = vadd.f32 %v1021, %v1189
        %v1191 = vpop.f32.mrf.mxu0
        %v1192 = vadd.f32 %v1023, %v1191
        %1193 = vmatmul.bf16.gmra.mxu0 %v703
        %v1194 = vpop.f32.mrf.mxu0
        %v1195 = vadd.f32 %v1026, %v1194
        %v1196 = vpop.f32.mrf.mxu0
        %v1197 = vadd.f32 %v1028, %v1196
        %1198 = vmatmul.bf16.gmra.mxu0 %v705
        %v1199 = vpop.f32.mrf.mxu0
        %v1200 = vadd.f32 %v1031, %v1199
        %v1201 = vpop.f32.mrf.mxu0
        %v1202 = vadd.f32 %v1033, %v1201
        %1203 = vdwg.mxu0
        %v1204 = vadd.f32 %v290, %v1045
        %v1205 = vadd.f32 %v291, %v1047
        %v1206 = vadd.f32 %v292, %v1050
        %v1207 = vadd.f32 %v293, %v1052
        %v1208 = vadd.f32 %v294, %v1055
        %v1209 = vadd.f32 %v295, %v1057
        %v1210 = vadd.f32 %v296, %v1060
        %v1211 = vadd.f32 %v297, %v1062
        %v1212 = vadd.f32 %v298, %v1065
        %v1213 = vadd.f32 %v299, %v1067
        %v1214 = vadd.f32 %v300, %v1070
        %v1215 = vadd.f32 %v301, %v1072
        %v1216 = vadd.f32 %v302, %v1075
        %v1217 = vadd.f32 %v303, %v1077
        %v1218 = vadd.f32 %v304, %v1080
        %v1219 = vadd.f32 %v305, %v1082
        %v1220 = vadd.f32 %v306, %v1085
        %v1221 = vadd.f32 %v307, %v1087
        %v1222 = vadd.f32 %v308, %v1090
        %v1223 = vadd.f32 %v309, %v1092
        %v1224 = vadd.f32 %v310, %v1095
        %v1225 = vadd.f32 %v311, %v1097
        %v1226 = vadd.f32 %v312, %v1100
        %v1227 = vadd.f32 %v313, %v1102
        %v1228 = vadd.f32 %v314, %v1105
        %v1229 = vadd.f32 %v315, %v1107
        %v1230 = vadd.f32 %v316, %v1110
        %v1231 = vadd.f32 %v317, %v1112
        %v1232 = vadd.f32 %v318, %v1115
        %v1233 = vadd.f32 %v319, %v1117
        %v1234 = vadd.f32 %v320, %v1120
        %v1235 = vadd.f32 %v321, %v1122
        %v1236 = vadd.f32 %v322, %v1125
        %v1237 = vadd.f32 %v323, %v1127
        %v1238 = vadd.f32 %v324, %v1130
        %v1239 = vadd.f32 %v325, %v1132
        %v1240 = vadd.f32 %v326, %v1135
        %v1241 = vadd.f32 %v327, %v1137
        %v1242 = vadd.f32 %v328, %v1140
        %v1243 = vadd.f32 %v329, %v1142
        %v1244 = vadd.f32 %v330, %v1145
        %v1245 = vadd.f32 %v331, %v1147
        %v1246 = vadd.f32 %v332, %v1150
        %v1247 = vadd.f32 %v333, %v1152
        %v1248 = vadd.f32 %v334, %v1155
        %v1249 = vadd.f32 %v335, %v1157
        %v1250 = vadd.f32 %v336, %v1160
        %v1251 = vadd.f32 %v337, %v1162
        %v1252 = vadd.f32 %v338, %v1165
        %v1253 = vadd.f32 %v339, %v1167
        %v1254 = vadd.f32 %v340, %v1170
        %v1255 = vadd.f32 %v341, %v1172
        %v1256 = vadd.f32 %v342, %v1175
        %v1257 = vadd.f32 %v343, %v1177
        %v1258 = vadd.f32 %v344, %v1180
        %v1259 = vadd.f32 %v345, %v1182
        %v1260 = vadd.f32 %v346, %v1185
        %v1261 = vadd.f32 %v347, %v1187
        %v1262 = vadd.f32 %v348, %v1190
        %v1263 = vadd.f32 %v349, %v1192
        %v1264 = vadd.f32 %v350, %v1195
        %v1265 = vadd.f32 %v351, %v1197
        %v1266 = vadd.f32 %v352, %v1200
        %v1267 = vadd.f32 %v353, %v1202
        %1268 = vst [vmem:[#allocation2] sm:$0xff] %v1204
        %1269 = vst [vmem:[#allocation2 + $0x8] sm:$0xff] %v1205
        %1270 = vst [vmem:[#allocation2 + $0x10] sm:$0xff] %v1206
        %1271 = vst [vmem:[#allocation2 + $0x18] sm:$0xff] %v1207
        %1272 = vst [vmem:[#allocation2 + $0x20] sm:$0xff] %v1208
        %1273 = vst [vmem:[#allocation2 + $0x28] sm:$0xff] %v1209
        %1274 = vst [vmem:[#allocation2 + $0x30] sm:$0xff] %v1210
        %1275 = vst [vmem:[#allocation2 + $0x38] sm:$0xff] %v1211
        %1276 = vst [vmem:[#allocation2 + $0x40] sm:$0xff] %v1212
        %1277 = vst [vmem:[#allocation2 + $0x48] sm:$0xff] %v1213
        %1278 = vst [vmem:[#allocation2 + $0x50] sm:$0xff] %v1214
        %1279 = vst [vmem:[#allocation2 + $0x58] sm:$0xff] %v1215
        %1280 = vst [vmem:[#allocation2 + $0x60] sm:$0xff] %v1216
        %1281 = vst [vmem:[#allocation2 + $0x68] sm:$0xff] %v1217
        %1282 = vst [vmem:[#allocation2 + $0x70] sm:$0xff] %v1218
        %1283 = vst [vmem:[#allocation2 + $0x78] sm:$0xff] %v1219
        %1284 = vst [vmem:[#allocation2 + $0x80] sm:$0xff] %v1220
        %1285 = vst [vmem:[#allocation2 + $0x88] sm:$0xff] %v1221
        %1286 = vst [vmem:[#allocation2 + $0x90] sm:$0xff] %v1222
        %1287 = vst [vmem:[#allocation2 + $0x98] sm:$0xff] %v1223
        %1288 = vst [vmem:[#allocation2 + $0xa0] sm:$0xff] %v1224
        %1289 = vst [vmem:[#allocation2 + $0xa8] sm:$0xff] %v1225
        %1290 = vst [vmem:[#allocation2 + $0xb0] sm:$0xff] %v1226
        %1291 = vst [vmem:[#allocation2 + $0xb8] sm:$0xff] %v1227
        %1292 = vst [vmem:[#allocation2 + $0xc0] sm:$0xff] %v1228
        %1293 = vst [vmem:[#allocation2 + $0xc8] sm:$0xff] %v1229
        %1294 = vst [vmem:[#allocation2 + $0xd0] sm:$0xff] %v1230
        %1295 = vst [vmem:[#allocation2 + $0xd8] sm:$0xff] %v1231
        %1296 = vst [vmem:[#allocation2 + $0xe0] sm:$0xff] %v1232
        %1297 = vst [vmem:[#allocation2 + $0xe8] sm:$0xff] %v1233
        %1298 = vst [vmem:[#allocation2 + $0xf0] sm:$0xff] %v1234
        %1299 = vst [vmem:[#allocation2 + $0xf8] sm:$0xff] %v1235
        %1300 = vst [vmem:[#allocation2 + $0x100] sm:$0xff] %v1236
        %1301 = vst [vmem:[#allocation2 + $0x108] sm:$0xff] %v1237
        %1302 = vst [vmem:[#allocation2 + $0x110] sm:$0xff] %v1238
        %1303 = vst [vmem:[#allocation2 + $0x118] sm:$0xff] %v1239
        %1304 = vst [vmem:[#allocation2 + $0x120] sm:$0xff] %v1240
        %1305 = vst [vmem:[#allocation2 + $0x128] sm:$0xff] %v1241
        %1306 = vst [vmem:[#allocation2 + $0x130] sm:$0xff] %v1242
        %1307 = vst [vmem:[#allocation2 + $0x138] sm:$0xff] %v1243
        %1308 = vst [vmem:[#allocation2 + $0x140] sm:$0xff] %v1244
        %1309 = vst [vmem:[#allocation2 + $0x148] sm:$0xff] %v1245
        %1310 = vst [vmem:[#allocation2 + $0x150] sm:$0xff] %v1246
        %1311 = vst [vmem:[#allocation2 + $0x158] sm:$0xff] %v1247
        %1312 = vst [vmem:[#allocation2 + $0x160] sm:$0xff] %v1248
        %1313 = vst [vmem:[#allocation2 + $0x168] sm:$0xff] %v1249
        %1314 = vst [vmem:[#allocation2 + $0x170] sm:$0xff] %v1250
        %1315 = vst [vmem:[#allocation2 + $0x178] sm:$0xff] %v1251
        %1316 = vst [vmem:[#allocation2 + $0x180] sm:$0xff] %v1252
        %1317 = vst [vmem:[#allocation2 + $0x188] sm:$0xff] %v1253
        %1318 = vst [vmem:[#allocation2 + $0x190] sm:$0xff] %v1254
        %1319 = vst [vmem:[#allocation2 + $0x198] sm:$0xff] %v1255
        %1320 = vst [vmem:[#allocation2 + $0x1a0] sm:$0xff] %v1256
        %1321 = vst [vmem:[#allocation2 + $0x1a8] sm:$0xff] %v1257
        %1322 = vst [vmem:[#allocation2 + $0x1b0] sm:$0xff] %v1258
        %1323 = vst [vmem:[#allocation2 + $0x1b8] sm:$0xff] %v1259
        %1324 = vst [vmem:[#allocation2 + $0x1c0] sm:$0xff] %v1260
        %1325 = vst [vmem:[#allocation2 + $0x1c8] sm:$0xff] %v1261
        %1326 = vst [vmem:[#allocation2 + $0x1d0] sm:$0xff] %v1262
        %1327 = vst [vmem:[#allocation2 + $0x1d8] sm:$0xff] %v1263
        %1328 = vst [vmem:[#allocation2 + $0x1e0] sm:$0xff] %v1264
        %1329 = vst [vmem:[#allocation2 + $0x1e8] sm:$0xff] %v1265
        %1330 = vst [vmem:[#allocation2 + $0x1f0] sm:$0xff] %v1266
        %1331 = vst [vmem:[#allocation2 + $0x1f8] sm:$0xff] %v1267
        // Predicated region
        $region41: #{tpu_custom_call.1} parent=27 // pred_check
          %p1332 = pneg %p222
        $region42: #{tpu_custom_call.1} parent=27 // pred_check_branch
          %1334 = sbr.rel (%p1332) target = $region44
        $region43: #{tpu_custom_call.1} parent=27 // pred_region
          %v1335 = vld [vmem:[#allocation2] sm:$0xff]
          %v1336 = vld [vmem:[#allocation2 + $0x8] sm:$0xff]
          %v1337 = vld [vmem:[#allocation2 + $0x10] sm:$0xff]
          %v1338 = vld [vmem:[#allocation2 + $0x18] sm:$0xff]
          %v1339 = vld [vmem:[#allocation2 + $0x20] sm:$0xff]
          %v1340 = vld [vmem:[#allocation2 + $0x28] sm:$0xff]
          %v1341 = vld [vmem:[#allocation2 + $0x30] sm:$0xff]
          %v1342 = vld [vmem:[#allocation2 + $0x38] sm:$0xff]
          %v1343 = vld [vmem:[#allocation2 + $0x40] sm:$0xff]
          %v1344 = vld [vmem:[#allocation2 + $0x48] sm:$0xff]
          %v1345 = vld [vmem:[#allocation2 + $0x50] sm:$0xff]
          %v1346 = vld [vmem:[#allocation2 + $0x58] sm:$0xff]
          %v1347 = vld [vmem:[#allocation2 + $0x60] sm:$0xff]
          %v1348 = vld [vmem:[#allocation2 + $0x68] sm:$0xff]
          %v1349 = vld [vmem:[#allocation2 + $0x70] sm:$0xff]
          %v1350 = vld [vmem:[#allocation2 + $0x78] sm:$0xff]
          %v1351 = vld [vmem:[#allocation2 + $0x80] sm:$0xff]
          %v1352 = vld [vmem:[#allocation2 + $0x88] sm:$0xff]
          %v1353 = vld [vmem:[#allocation2 + $0x90] sm:$0xff]
          %v1354 = vld [vmem:[#allocation2 + $0x98] sm:$0xff]
          %v1355 = vld [vmem:[#allocation2 + $0xa0] sm:$0xff]
          %v1356 = vld [vmem:[#allocation2 + $0xa8] sm:$0xff]
          %v1357 = vld [vmem:[#allocation2 + $0xb0] sm:$0xff]
          %v1358 = vld [vmem:[#allocation2 + $0xb8] sm:$0xff]
          %v1359 = vld [vmem:[#allocation2 + $0xc0] sm:$0xff]
          %v1360 = vld [vmem:[#allocation2 + $0xc8] sm:$0xff]
          %v1361 = vld [vmem:[#allocation2 + $0xd0] sm:$0xff]
          %v1362 = vld [vmem:[#allocation2 + $0xd8] sm:$0xff]
          %v1363 = vld [vmem:[#allocation2 + $0xe0] sm:$0xff]
          %v1364 = vld [vmem:[#allocation2 + $0xe8] sm:$0xff]
          %v1365 = vld [vmem:[#allocation2 + $0xf0] sm:$0xff]
          %v1366 = vld [vmem:[#allocation2 + $0xf8] sm:$0xff]
          %v1367 = vld [vmem:[#allocation2 + $0x100] sm:$0xff]
          %v1368 = vld [vmem:[#allocation2 + $0x108] sm:$0xff]
          %v1369 = vld [vmem:[#allocation2 + $0x110] sm:$0xff]
          %v1370 = vld [vmem:[#allocation2 + $0x118] sm:$0xff]
          %v1371 = vld [vmem:[#allocation2 + $0x120] sm:$0xff]
          %v1372 = vld [vmem:[#allocation2 + $0x128] sm:$0xff]
          %v1373 = vld [vmem:[#allocation2 + $0x130] sm:$0xff]
          %v1374 = vld [vmem:[#allocation2 + $0x138] sm:$0xff]
          %v1375 = vld [vmem:[#allocation2 + $0x140] sm:$0xff]
          %v1376 = vld [vmem:[#allocation2 + $0x148] sm:$0xff]
          %v1377 = vld [vmem:[#allocation2 + $0x150] sm:$0xff]
          %v1378 = vld [vmem:[#allocation2 + $0x158] sm:$0xff]
          %v1379 = vld [vmem:[#allocation2 + $0x160] sm:$0xff]
          %v1380 = vld [vmem:[#allocation2 + $0x168] sm:$0xff]
          %v1381 = vld [vmem:[#allocation2 + $0x170] sm:$0xff]
          %v1382 = vld [vmem:[#allocation2 + $0x178] sm:$0xff]
          %v1383 = vld [vmem:[#allocation2 + $0x180] sm:$0xff]
          %v1384 = vld [vmem:[#allocation2 + $0x188] sm:$0xff]
          %v1385 = vld [vmem:[#allocation2 + $0x190] sm:$0xff]
          %v1386 = vld [vmem:[#allocation2 + $0x198] sm:$0xff]
          %v1387 = vld [vmem:[#allocation2 + $0x1a0] sm:$0xff]
          %v1388 = vld [vmem:[#allocation2 + $0x1a8] sm:$0xff]
          %v1389 = vld [vmem:[#allocation2 + $0x1b0] sm:$0xff]
          %v1390 = vld [vmem:[#allocation2 + $0x1b8] sm:$0xff]
          %v1391 = vld [vmem:[#allocation2 + $0x1c0] sm:$0xff]
          %v1392 = vld [vmem:[#allocation2 + $0x1c8] sm:$0xff]
          %v1393 = vld [vmem:[#allocation2 + $0x1d0] sm:$0xff]
          %v1394 = vld [vmem:[#allocation2 + $0x1d8] sm:$0xff]
          %v1395 = vld [vmem:[#allocation2 + $0x1e0] sm:$0xff]
          %v1396 = vld [vmem:[#allocation2 + $0x1e8] sm:$0xff]
          %v1397 = vld [vmem:[#allocation2 + $0x1f0] sm:$0xff]
          %v1398 = vld [vmem:[#allocation2 + $0x1f8] sm:$0xff]
          %1399 = vst [vmem:[%s217] sm:$0xff] %v1335
          %1400 = vst [vmem:[%s217 + $0x8] sm:$0xff] %v1336
          %1401 = vst [vmem:[%s217 + $0x10] sm:$0xff] %v1337
          %1402 = vst [vmem:[%s217 + $0x18] sm:$0xff] %v1338
          %1403 = vst [vmem:[%s217 + $0x20] sm:$0xff] %v1339
          %1404 = vst [vmem:[%s217 + $0x28] sm:$0xff] %v1340
          %1405 = vst [vmem:[%s217 + $0x30] sm:$0xff] %v1341
          %1406 = vst [vmem:[%s217 + $0x38] sm:$0xff] %v1342
          %1407 = vst [vmem:[%s217 + $0x40] sm:$0xff] %v1343
          %1408 = vst [vmem:[%s217 + $0x48] sm:$0xff] %v1344
          %1409 = vst [vmem:[%s217 + $0x50] sm:$0xff] %v1345
          %1410 = vst [vmem:[%s217 + $0x58] sm:$0xff] %v1346
          %1411 = vst [vmem:[%s217 + $0x60] sm:$0xff] %v1347
          %1412 = vst [vmem:[%s217 + $0x68] sm:$0xff] %v1348
          %1413 = vst [vmem:[%s217 + $0x70] sm:$0xff] %v1349
          %1414 = vst [vmem:[%s217 + $0x78] sm:$0xff] %v1350
          %1415 = vst [vmem:[%s217 + $0x80] sm:$0xff] %v1351
          %1416 = vst [vmem:[%s217 + $0x88] sm:$0xff] %v1352
          %1417 = vst [vmem:[%s217 + $0x90] sm:$0xff] %v1353
          %1418 = vst [vmem:[%s217 + $0x98] sm:$0xff] %v1354
          %1419 = vst [vmem:[%s217 + $0xa0] sm:$0xff] %v1355
          %1420 = vst [vmem:[%s217 + $0xa8] sm:$0xff] %v1356
          %1421 = vst [vmem:[%s217 + $0xb0] sm:$0xff] %v1357
          %1422 = vst [vmem:[%s217 + $0xb8] sm:$0xff] %v1358
          %1423 = vst [vmem:[%s217 + $0xc0] sm:$0xff] %v1359
          %1424 = vst [vmem:[%s217 + $0xc8] sm:$0xff] %v1360
          %1425 = vst [vmem:[%s217 + $0xd0] sm:$0xff] %v1361
          %1426 = vst [vmem:[%s217 + $0xd8] sm:$0xff] %v1362
          %1427 = vst [vmem:[%s217 + $0xe0] sm:$0xff] %v1363
          %1428 = vst [vmem:[%s217 + $0xe8] sm:$0xff] %v1364
          %1429 = vst [vmem:[%s217 + $0xf0] sm:$0xff] %v1365
          %1430 = vst [vmem:[%s217 + $0xf8] sm:$0xff] %v1366
          %1431 = vst [vmem:[%s217 + $0x100] sm:$0xff] %v1367
          %1432 = vst [vmem:[%s217 + $0x108] sm:$0xff] %v1368
          %1433 = vst [vmem:[%s217 + $0x110] sm:$0xff] %v1369
          %1434 = vst [vmem:[%s217 + $0x118] sm:$0xff] %v1370
          %1435 = vst [vmem:[%s217 + $0x120] sm:$0xff] %v1371
          %1436 = vst [vmem:[%s217 + $0x128] sm:$0xff] %v1372
          %1437 = vst [vmem:[%s217 + $0x130] sm:$0xff] %v1373
          %1438 = vst [vmem:[%s217 + $0x138] sm:$0xff] %v1374
          %1439 = vst [vmem:[%s217 + $0x140] sm:$0xff] %v1375
          %1440 = vst [vmem:[%s217 + $0x148] sm:$0xff] %v1376
          %1441 = vst [vmem:[%s217 + $0x150] sm:$0xff] %v1377
          %1442 = vst [vmem:[%s217 + $0x158] sm:$0xff] %v1378
          %1443 = vst [vmem:[%s217 + $0x160] sm:$0xff] %v1379
          %1444 = vst [vmem:[%s217 + $0x168] sm:$0xff] %v1380
          %1445 = vst [vmem:[%s217 + $0x170] sm:$0xff] %v1381
          %1446 = vst [vmem:[%s217 + $0x178] sm:$0xff] %v1382
          %1447 = vst [vmem:[%s217 + $0x180] sm:$0xff] %v1383
          %1448 = vst [vmem:[%s217 + $0x188] sm:$0xff] %v1384
          %1449 = vst [vmem:[%s217 + $0x190] sm:$0xff] %v1385
          %1450 = vst [vmem:[%s217 + $0x198] sm:$0xff] %v1386
          %1451 = vst [vmem:[%s217 + $0x1a0] sm:$0xff] %v1387
          %1452 = vst [vmem:[%s217 + $0x1a8] sm:$0xff] %v1388
          %1453 = vst [vmem:[%s217 + $0x1b0] sm:$0xff] %v1389
          %1454 = vst [vmem:[%s217 + $0x1b8] sm:$0xff] %v1390
          %1455 = vst [vmem:[%s217 + $0x1c0] sm:$0xff] %v1391
          %1456 = vst [vmem:[%s217 + $0x1c8] sm:$0xff] %v1392
          %1457 = vst [vmem:[%s217 + $0x1d0] sm:$0xff] %v1393
          %1458 = vst [vmem:[%s217 + $0x1d8] sm:$0xff] %v1394
          %1459 = vst [vmem:[%s217 + $0x1e0] sm:$0xff] %v1395
          %1460 = vst [vmem:[%s217 + $0x1e8] sm:$0xff] %v1396
          %1461 = vst [vmem:[%s217 + $0x1f0] sm:$0xff] %v1397
          %1462 = vst [vmem:[%s217 + $0x1f8] sm:$0xff] %v1398
        $region44: #{tpu_custom_call.1} parent=27 // pred_fallthru
          _
        %s1463 = sand.u32 %s105, 1
        %s1464 = scalar_lea.sflag [#allocation5], %s1463
        %s1465 = sand.u32 %s105, 1
        %s1466 = smul.addr %s1465, 512
        %s1467 = scalar_lea.vmem [#allocation8], %s1466
        // Predicated region
        $region45: #{tpu_custom_call.1} parent=27 // pred_check
          %p1468 = pneg %p115
        $region46: #{tpu_custom_call.1} parent=27 // pred_check_branch
          %1470 = sbr.rel (%p1468) target = $region48
        $region47: #{tpu_custom_call.1} parent=27 // pred_region
          %s1471 = smul.u32 64, %s25
          %1473 = vsyncadd %s1464, 0
          %s1474 = sadd.s32 %s26, %s1471
          %s1475 = smul.addr %s1474, 8
          %s1476 = scalar_lea.hbm %s2, %s1475
          %s1477 = sshll.u32 %s1467, 4
          %s1478 = int_to_ptr.vmem [resolvable:$true] %s1477
          %s1479 = sshll.u32 %s1476, 4
          %s1480 = int_to_ptr.hbm [resolvable:$true] %s1479
          %1485 = dma.vmem_to_hbm [thread:$0]  %s1478, 8192, %s1480, %s1464, 128, 128, 8
        $region48: #{tpu_custom_call.1} parent=27 // pred_fallthru
          _
      $region28: #{tpu_custom_call.1} parent=5 // pred_fallthru
        _
      %p1486 = scmp.le.s32.totalorder 2, %s15
      // Predicated region
      $region49: #{tpu_custom_call.1} parent=5 // pred_check
        %p1487 = pneg %p1486
      $region50: #{tpu_custom_call.1} parent=5 // pred_check_branch
        %1489 = sbr.rel (%p1487) target = $region52
      $region51: #{tpu_custom_call.1} parent=5 // pred_region
        %s1490 = ssub.s32 %s15, 2
        // Predicated region
        $region53: #{tpu_custom_call.1} parent=51 // pred_check
          %p1491 = pneg %p121
        $region54: #{tpu_custom_call.1} parent=51 // pred_check_branch
          %1493 = sbr.rel (%p1491) target = $region56
        $region55: #{tpu_custom_call.1} parent=51 // pred_region
          %s1494 = sand.u32 %s106, 1
          %s1495 = scalar_lea.sflag [#allocation5], %s1494
          %s1496 = sand.u32 %s106, 1
          %s1497 = smul.addr %s1496, 512
          %s1498 = scalar_lea.vmem [#allocation8], %s1497
          %1500 = dma.done %s1495, 8192
        $region56: #{tpu_custom_call.1} parent=51 // pred_fallthru
          _
      $region52: #{tpu_custom_call.1} parent=5 // pred_fallthru
        _
    $region6: #{tpu_custom_call.1} parent=1 // loop_footer
      %s19 = sadd.s32 1, %s15
    $region7: #{tpu_custom_call.1} parent=1 // loop_footer_branch
      %14 = sbr.rel target = $region3
    $region8: #{tpu_custom_call.1} parent=1 // loop_exit
      _
    %1501 = vsyncpa [#allocation4], 1
    %s1502 = scalar_lea.sflag [#allocation4], 1
    %1503 = vsyncpa %s1502, 1
    %1504 = vsyncpa [#allocation7], 1
    %1505 = vsyncpa [#allocation5], 1
    %s1506 = scalar_lea.sflag [#allocation5], 1
    %1507 = vsyncpa %s1506, 1

</llo_original>
